<compile_context>
chip_gen: v7x
topology: tpu7x:2x2x1
jax: 0.10.0
libtpu: 0.0.40
codegen_flags: <defaults>
</compile_context>

<pallas_src>
import jax
import jax.numpy as jnp
from jax.experimental import pallas as pl
from jax.experimental.pallas import tpu as pltpu

IN_FEATURES = 2048   # shape_pos[1]
HIDDEN = 256
OUT = 1


def _round_up(a, b):
    return (a + b - 1) // b * b


def mlp_kernel(x_ref, w1_ref, b1_ref, w2_ref, b2_ref, o_ref):
    """One row-tile of the MLP.

    x_ref : (tm, IN_FEATURES) bf16      -- row tile of the input
    w1_ref: (IN_FEATURES, HIDDEN) bf16  -- resident across the grid
    b1_ref: (1, HIDDEN) f32
    w2_ref: (1, HIDDEN) f32             -- second layer weights as a row vector
    b2_ref: (1, 1) f32
    o_ref : (1, 1, tm) f32              -- lane-dense output row
    """
    # Layer 1: bf16 MXU matmul with f32 accumulation, + bias, ReLU (f32 VPU).
    h = jnp.dot(x_ref[...], w1_ref[...], preferred_element_type=jnp.float32)
    h = jnp.maximum(h + b1_ref[...], 0.0)                  # (tm, HIDDEN) f32

    # Dropout(p=0.5): identity at inference time.
    # TODO(synk): training-mode dropout (random mask + 1/(1-p) scaling) not implemented.

    # Layer 2 (HIDDEN -> 1): with a single output column the MXU would sit at <1%
    # utilization, so use a VPU multiply + XLU lane reduction instead.
    z = jnp.sum(h * w2_ref[...], axis=-1)                  # (tm,) f32
    z = z[None, None, :] + b2_ref[...].reshape(1, 1, 1)    # (1, 1, tm) lane-dense

    # Sigmoid on the EUP slot: exp + approximate reciprocal (no f32 VPU divide).
    o_ref[...] = pl.reciprocal(1.0 + jnp.exp(-z), approx=True).astype(o_ref.dtype)


def net_forward(x, w1, b1, w2, b2, *, tm=512):
    """x: anything reshapeable to (-1, IN_FEATURES). Returns (n, OUT) f32."""
    x2d = x.reshape(-1, IN_FEATURES)          # mirrors x.view(-1, shape_pos[1])
    n = x2d.shape[0]

    # Row tile: large to amortize per-grid-step overhead; multiple of 16 (bf16 sublane
    # packing).  tm=512 in bf16 uses ~4 MiB for the double-buffered x tile + 2 MiB for W1,
    # comfortably inside scoped VMEM on v5e/v6e/v7x.
    tm = _round_up(min(tm, _round_up(n, 16)), 16)
    n_pad = _round_up(n, tm)
    if n_pad != n:
        x2d = jnp.pad(x2d, ((0, n_pad - n), (0, 0)))
    grid_n = n_pad // tm

    # bf16 layer-1 operands (halved HBM traffic / VMEM, faster MXU); f32 accumulate.
    x_bf16 = x2d.astype(jnp.bfloat16)
    w1_bf16 = w1.astype(jnp.bfloat16)
    b1_row = b1.reshape(1, HIDDEN).astype(jnp.float32)
    w2_row = w2.reshape(1, HIDDEN).astype(jnp.float32)
    b2_11 = b2.reshape(1, 1).astype(jnp.float32)

    out3d = pl.pallas_call(
        mlp_kernel,
        out_shape=jax.ShapeDtypeStruct((grid_n, 1, tm), jnp.float32),
        grid_spec=pltpu.PrefetchScalarGridSpec(
            num_scalar_prefetch=0,
            grid=(grid_n,),
            in_specs=[
                # x row tile (bf16).  If the x DMA is still exposed on v6e, add
                # pipeline_mode=pl.Buffered(3) here.
                pl.BlockSpec((tm, IN_FEATURES), lambda i: (i, 0)),
                pl.BlockSpec((IN_FEATURES, HIDDEN), lambda i: (0, 0)),  # W1 (resident)
                pl.BlockSpec((1, HIDDEN), lambda i: (0, 0)),            # b1
                pl.BlockSpec((1, HIDDEN), lambda i: (0, 0)),            # W2 row
                pl.BlockSpec((1, 1), lambda i: (0, 0)),                 # b2
            ],
            # Lane-dense output: each step writes one (1, 1, tm) row -> full-lane stores.
            out_specs=pl.BlockSpec((1, 1, tm), lambda i: (i, 0, 0)),
        ),
        compiler_params=pltpu.CompilerParams(
            dimension_semantics=("parallel",),   # batch axis shards across v7x's 2 TCs
            vmem_limit_bytes=32 * 1024 * 1024,
        ),
    )(x_bf16, w1_bf16, b1_row, w2_row, b2_11)

    # (grid_n, 1, tm) flattens in batch order; drop padding rows.
    return out3d.reshape(n_pad, OUT)[:n]


def init_params(key):
    k1, k2, k3, k4 = jax.random.split(key, 4)
    # PyTorch nn.Linear default init: U(-1/sqrt(fan_in), 1/sqrt(fan_in))
    lim1 = 1.0 / jnp.sqrt(IN_FEATURES)
    lim2 = 1.0 / jnp.sqrt(HIDDEN)
    w1 = jax.random.uniform(k1, (IN_FEATURES, HIDDEN), jnp.float32, -lim1, lim1)
    b1 = jax.random.uniform(k2, (1, HIDDEN), jnp.float32, -lim1, lim1)
    w2 = jax.random.uniform(k3, (HIDDEN, OUT), jnp.float32, -lim2, lim2)
    b2 = jax.random.uniform(k4, (1, OUT), jnp.float32, -lim2, lim2)
    return w1, b1, w2, b2


if __name__ == "__main__":
    key = jax.random.PRNGKey(0)
    kx, kp = jax.random.split(key)

    batch = 8
    x = jax.random.uniform(kx, (batch, IN_FEATURES), jnp.float32)  # tf-idf-like input
    w1, b1, w2, b2 = init_params(kp)

    y = jax.block_until_ready(net_forward(x, w1, b1, w2, b2))
    assert y.shape == (batch, OUT)

    # Pure-JAX reference (same bf16 layer-1 operands, f32 accumulate).
    xb = x.astype(jnp.bfloat16).astype(jnp.float32)
    w1b = w1.astype(jnp.bfloat16).astype(jnp.float32)
    h_ref = jnp.maximum(xb @ w1b + b1, 0.0)
    y_ref = jax.nn.sigmoid(h_ref @ w2 + b2)
    assert jnp.allclose(y, y_ref, atol=2e-3, rtol=2e-3), float(jnp.max(jnp.abs(y - y_ref)))

    # Ragged batch (not a multiple of the tile) exercises the padding path.
    x2 = jax.random.uniform(kp, (10, IN_FEATURES), jnp.float32)
    y2 = jax.block_until_ready(net_forward(x2, w1, b1, w2, b2))
    assert y2.shape == (10, OUT)

    print("KERNEL_OK")
</pallas_src>

<mosaic_0001>
module attributes {stable_mosaic.version = 11 : i64} {
  func.func @mlp_kernel(%arg0: i32, %arg1: memref<16x2048xbf16, #tpu.memory_space<vmem>>, %arg2: memref<2048x256xbf16, #tpu.memory_space<vmem>>, %arg3: memref<1x256xf32, #tpu.memory_space<vmem>>, %arg4: memref<1x256xf32, #tpu.memory_space<vmem>>, %arg5: memref<1x1xf32, #tpu.memory_space<vmem>>, %arg6: memref<1x1x16xf32, #tpu.memory_space<vmem>>) attributes {dimension_semantics = [#tpu.dimension_semantics<parallel>], iteration_bounds = array<i64: 1>, scalar_prefetch = 0 : i64, scratch_operands = 0 : i64, tpu.core_type = #tpu.core_type<tc>, window_params = [{transform_indices = @transform_0, window_bounds = array<i64: 16, 2048>}, {pipeline_mode = #tpu.pipeline_mode<synchronous>, transform_indices = @transform_1, window_bounds = array<i64: 2048, 256>}, {pipeline_mode = #tpu.pipeline_mode<synchronous>, transform_indices = @transform_2, window_bounds = array<i64: 1, 256>}, {pipeline_mode = #tpu.pipeline_mode<synchronous>, transform_indices = @transform_3, window_bounds = array<i64: 1, 256>}, {pipeline_mode = #tpu.pipeline_mode<synchronous>, transform_indices = @transform_4, window_bounds = array<i64: 1, 1>}, {transform_indices = @transform_5, window_bounds = array<i64: 1, 1, 16>}]} {
    %c0 = arith.constant 0 : index
    %c0_0 = arith.constant 0 : index
    %0 = vector.load %arg1[%c0, %c0_0] : memref<16x2048xbf16, #tpu.memory_space<vmem>>, vector<16x2048xbf16>
    %c0_1 = arith.constant 0 : index
    %c0_2 = arith.constant 0 : index
    %1 = vector.load %arg2[%c0_1, %c0_2] : memref<2048x256xbf16, #tpu.memory_space<vmem>>, vector<2048x256xbf16>
    %cst = arith.constant dense<0.000000e+00> : vector<16x256xf32>
    %2 = tpu.matmul %0, %1, %cst {dimension_numbers = #tpu.dot_dimension_numbers<[1], [0], [0], [1], [0, 0, 1, 1], [], []>} : vector<16x2048xbf16>, vector<2048x256xbf16>, vector<16x256xf32> -> vector<16x256xf32>
    %c0_3 = arith.constant 0 : index
    %c0_4 = arith.constant 0 : index
    %3 = vector.load %arg3[%c0_3, %c0_4] : memref<1x256xf32, #tpu.memory_space<vmem>>, vector<1x256xf32>
    %4 = vector.broadcast %3 : vector<1x256xf32> to vector<16x256xf32>
    %5 = arith.addf %2, %4 : vector<16x256xf32>
    %cst_5 = arith.constant 0.000000e+00 : f32
    %6 = vector.broadcast %cst_5 : f32 to vector<16x256xf32>
    %7 = arith.maximumf %5, %6 : vector<16x256xf32>
    %c0_6 = arith.constant 0 : index
    %c0_7 = arith.constant 0 : index
    %8 = vector.load %arg4[%c0_6, %c0_7] : memref<1x256xf32, #tpu.memory_space<vmem>>, vector<1x256xf32>
    %9 = vector.broadcast %8 : vector<1x256xf32> to vector<16x256xf32>
    %10 = arith.mulf %7, %9 : vector<16x256xf32>
    %cst_8 = arith.constant dense<0.000000e+00> : vector<16xf32>
    %11 = vector.multi_reduction <add>, %10, %cst_8 [1] : vector<16x256xf32> to vector<16xf32>
    %12 = vector.shape_cast %11 : vector<16xf32> to vector<1x1x16xf32>
    %c0_9 = arith.constant 0 : index
    %c0_10 = arith.constant 0 : index
    %13 = vector.load %arg5[%c0_9, %c0_10] : memref<1x1xf32, #tpu.memory_space<vmem>>, vector<1x1xf32>
    %14 = vector.shape_cast %13 : vector<1x1xf32> to vector<1x1x1xf32>
    %15 = vector.broadcast %14 : vector<1x1x1xf32> to vector<1x1x16xf32>
    %16 = arith.addf %12, %15 : vector<1x1x16xf32>
    %cst_11 = arith.constant 0.000000e+00 : f32
    %17 = vector.broadcast %cst_11 : f32 to vector<1x1x16xf32>
    %18 = arith.subf %17, %16 : vector<1x1x16xf32>
    %19 = math.exp %18 : vector<1x1x16xf32>
    %cst_12 = arith.constant 1.000000e+00 : f32
    %20 = vector.broadcast %cst_12 : f32 to vector<1x1x16xf32>
    %21 = arith.addf %20, %19 : vector<1x1x16xf32>
    %22 = tpu.reciprocal %21 {approx = true} : vector<1x1x16xf32> -> vector<1x1x16xf32>
    %c0_13 = arith.constant 0 : index
    %c0_14 = arith.constant 0 : index
    %c0_15 = arith.constant 0 : index
    %23 = vector.load %arg6[%c0_13, %c0_14, %c0_15] : memref<1x1x16xf32, #tpu.memory_space<vmem>>, vector<1x1x16xf32>
    tpu.vector_store %arg6[%c0_13, %c0_14, %c0_15], %22 {strides = array<i32>} : memref<1x1x16xf32, #tpu.memory_space<vmem>>, vector<1x1x16xf32>,
    return
  }
  func.func @transform_0(%arg0: i32) -> (i32, i32) {
    %c0_i32 = arith.constant 0 : i32
    %c0_i32_0 = arith.constant 0 : i32
    return %arg0, %c0_i32 : i32, i32
  }
  func.func @transform_1(%arg0: i32) -> (i32, i32) {
    %c0_i32 = arith.constant 0 : i32
    %c0_i32_0 = arith.constant 0 : i32
    %c0_i32_1 = arith.constant 0 : i32
    return %c0_i32, %c0_i32_0 : i32, i32
  }
  func.func @transform_2(%arg0: i32) -> (i32, i32) {
    %c0_i32 = arith.constant 0 : i32
    %c0_i32_0 = arith.constant 0 : i32
    %c0_i32_1 = arith.constant 0 : i32
    return %c0_i32, %c0_i32_0 : i32, i32
  }
  func.func @transform_3(%arg0: i32) -> (i32, i32) {
    %c0_i32 = arith.constant 0 : i32
    %c0_i32_0 = arith.constant 0 : i32
    %c0_i32_1 = arith.constant 0 : i32
    return %c0_i32, %c0_i32_0 : i32, i32
  }
  func.func @transform_4(%arg0: i32) -> (i32, i32) {
    %c0_i32 = arith.constant 0 : i32
    %c0_i32_0 = arith.constant 0 : i32
    %c0_i32_1 = arith.constant 0 : i32
    return %c0_i32, %c0_i32_0 : i32, i32
  }
  func.func @transform_5(%arg0: i32) -> (i32, i32, i32) {
    %c0_i32 = arith.constant 0 : i32
    %c0_i32_0 = arith.constant 0 : i32
    %c0_i32_1 = arith.constant 0 : i32
    return %arg0, %c0_i32, %c0_i32_0 : i32, i32, i32
  }
}

</mosaic_0001>

<llo_original>
// kernel: tpu_custom_call.1
$region0: #{tpu_custom_call.1}
  #allocation0 [shape = 'u32[]', space=smem, size = 0x4, offset = 0x4, fixed_abs, tag = 'smem constant byte address 0x4 - core index']
  #allocation1 [shape = 'u32[144,128]{1,0:T(1,128)}', space=vmem, size = 0x12000, scoped, tag = 'internal scratch']
  #allocation2 [shape = 'f32[1,1]{1,0:T(1,128)S(1)}', space=vmem, size = 0x200, scoped, tag = 'scoped memory for tpu_custom_call.1']
  %s0 = inlined_call_operand.hbm [shape: bf16[16,2048], index: 0, kind: input, shape index: {}]
  %s1 = inlined_call_operand.hbm [shape: bf16[2048,256], index: 1, kind: input, shape index: {}]
  %s2 = inlined_call_operand.vmem [shape: f32[1,256], index: 2, kind: input, shape index: {}]
  %s3 = inlined_call_operand.vmem [shape: f32[1,256], index: 3, kind: input, shape index: {}]
  %s4 = inlined_call_operand.<no memory space> [shape: f32[1,1], index: 4, kind: input, shape index: {}]
  %s5 = inlined_call_operand.hbm [shape: f32[1,1,16], index: 5, kind: output, shape index: {}]
  %s6 = sld [smem:[#allocation0]]
  $region38: #{tpu_custom_call.1} parent=0
    _
  %s8 = ssub.s32 1, %s6
  %s9 = scalar_select 0, %s8, %s6
  %v10 = vstv %s4
  %11 = vst [vmem:[#allocation2] sm:$0x1] %v10
  $region1: #{tpu_custom_call.1} parent=0
    #allocation3 [shape = 'u8[65536]{0}', space=vmem, size = 0x10000, scoped, tag = 'input window, operand 0, single buffered']
    #allocation4 [shape = 's32[1]{0}', space=sflag, size = 0x4, scoped, tag = 'scoped memory for tpu_custom_call.1']
    #allocation5 [shape = 's32[1]{0}', space=sflag, size = 0x4, scoped, tag = 'scoped memory for tpu_custom_call.1']
    #allocation6 [shape = 'u8[1048576]{0}', space=vmem, size = 0x100000, scoped, tag = 'input window, operand 1, single buffered']
    #allocation7 [shape = 's32[1]{0}', space=sflag, size = 0x4, scoped, tag = 'scoped memory for tpu_custom_call.1']
    #allocation8 [shape = 'u8[512]{0}', space=vmem, size = 0x400, scoped, tag = 'output window, operand 0, single buffered']
    %12 = vsyncpa [#allocation4], 0
    %13 = vsyncpa [#allocation7], 0
    %14 = vsyncpa [#allocation5], 0
    // Predicated region
    $region2: #{tpu_custom_call.1} parent=1 // pred_check
      _
    $region3: #{tpu_custom_call.1} parent=1 // pred_check_branch
      %16 = sbr.rel (0) target = $region5
    $region4: #{tpu_custom_call.1} parent=1 // pred_region
      %s18 = ssub.s32 2048, 2048
      %19 = vsyncadd [#allocation4], %s18
      %s20 = sshll.u32 [#allocation3], 4
      %s21 = int_to_ptr.vmem [resolvable:$true] %s20
      %26 = dma.hbm_to_vmem [thread:$0]  %s0, 2048, %s21, [#allocation4], 1024, 1024, 64
    $region5: #{tpu_custom_call.1} parent=1 // pred_fallthru
      _
    // Predicated region
    $region6: #{tpu_custom_call.1} parent=1 // pred_check
      _
    $region7: #{tpu_custom_call.1} parent=1 // pred_check_branch
      %28 = sbr.rel (0) target = $region9
    $region8: #{tpu_custom_call.1} parent=1 // pred_region
      %s30 = ssub.s32 32768, 32768
      %31 = vsyncadd [#allocation7], %s30
      %s32 = sshll.u32 [#allocation6], 4
      %s33 = int_to_ptr.vmem [resolvable:$true] %s32
      %38 = dma.hbm_to_vmem [thread:$0]  %s1, 32768, %s33, [#allocation7], 128, 128, 8
    $region9: #{tpu_custom_call.1} parent=1 // pred_fallthru
      _
    // Predicated region
    $region10: #{tpu_custom_call.1} parent=1 // pred_check
      _
    $region11: #{tpu_custom_call.1} parent=1 // pred_check_branch
      %40 = sbr.rel (0) target = $region13
    $region12: #{tpu_custom_call.1} parent=1 // pred_region
      _
    $region13: #{tpu_custom_call.1} parent=1 // pred_fallthru
      _
    // Predicated region
    $region14: #{tpu_custom_call.1} parent=1 // pred_check
      _
    $region15: #{tpu_custom_call.1} parent=1 // pred_check_branch
      %42 = sbr.rel (0) target = $region17
    $region16: #{tpu_custom_call.1} parent=1 // pred_region
      _
    $region17: #{tpu_custom_call.1} parent=1 // pred_fallthru
      _
    // Predicated region
    $region18: #{tpu_custom_call.1} parent=1 // pred_check
      _
    $region19: #{tpu_custom_call.1} parent=1 // pred_check_branch
      %44 = sbr.rel (0) target = $region21
    $region20: #{tpu_custom_call.1} parent=1 // pred_region
      _
    $region21: #{tpu_custom_call.1} parent=1 // pred_fallthru
      _
    // Predicated region
    $region22: #{tpu_custom_call.1} parent=1 // pred_check
      _
    $region23: #{tpu_custom_call.1} parent=1 // pred_check_branch
      %46 = sbr.rel (0) target = $region25
    $region24: #{tpu_custom_call.1} parent=1 // pred_region
      %47 = dma.done [#allocation4], 2048
    $region25: #{tpu_custom_call.1} parent=1 // pred_fallthru
      _
    // Predicated region
    $region26: #{tpu_custom_call.1} parent=1 // pred_check
      _
    $region27: #{tpu_custom_call.1} parent=1 // pred_check_branch
      %49 = sbr.rel (0) target = $region29
    $region28: #{tpu_custom_call.1} parent=1 // pred_region
      %50 = dma.done [#allocation7], 32768
    $region29: #{tpu_custom_call.1} parent=1 // pred_fallthru
      _
    %v51 = vld [vmem:[#allocation3] sm:$0xff]
    %v52 = vld [vmem:[#allocation3 + $0x8] sm:$0xff]
    %v53 = vld [vmem:[#allocation3 + $0x10] sm:$0xff]
    %v54 = vld [vmem:[#allocation3 + $0x18] sm:$0xff]
    %v55 = vld [vmem:[#allocation3 + $0x20] sm:$0xff]
    %v56 = vld [vmem:[#allocation3 + $0x28] sm:$0xff]
    %v57 = vld [vmem:[#allocation3 + $0x30] sm:$0xff]
    %v58 = vld [vmem:[#allocation3 + $0x38] sm:$0xff]
    %v59 = vld [vmem:[#allocation3 + $0x40] sm:$0xff]
    %v60 = vld [vmem:[#allocation3 + $0x48] sm:$0xff]
    %v61 = vld [vmem:[#allocation3 + $0x50] sm:$0xff]
    %v62 = vld [vmem:[#allocation3 + $0x58] sm:$0xff]
    %v63 = vld [vmem:[#allocation3 + $0x60] sm:$0xff]
    %v64 = vld [vmem:[#allocation3 + $0x68] sm:$0xff]
    %v65 = vld [vmem:[#allocation3 + $0x70] sm:$0xff]
    %v66 = vld [vmem:[#allocation3 + $0x78] sm:$0xff]
    %v67 = vld [vmem:[#allocation6] sm:$0xff]
    %v68 = vld [vmem:[#allocation6 + $0x8] sm:$0xff]
    %v69 = vld [vmem:[#allocation6 + $0x10] sm:$0xff]
    %v70 = vld [vmem:[#allocation6 + $0x18] sm:$0xff]
    %v71 = vld [vmem:[#allocation6 + $0x20] sm:$0xff]
    %v72 = vld [vmem:[#allocation6 + $0x28] sm:$0xff]
    %v73 = vld [vmem:[#allocation6 + $0x30] sm:$0xff]
    %v74 = vld [vmem:[#allocation6 + $0x38] sm:$0xff]
    %v75 = vld [vmem:[#allocation6 + $0x40] sm:$0xff]
    %v76 = vld [vmem:[#allocation6 + $0x48] sm:$0xff]
    %v77 = vld [vmem:[#allocation6 + $0x50] sm:$0xff]
    %v78 = vld [vmem:[#allocation6 + $0x58] sm:$0xff]
    %v79 = vld [vmem:[#allocation6 + $0x60] sm:$0xff]
    %v80 = vld [vmem:[#allocation6 + $0x68] sm:$0xff]
    %v81 = vld [vmem:[#allocation6 + $0x70] sm:$0xff]
    %v82 = vld [vmem:[#allocation6 + $0x78] sm:$0xff]
    %v83 = vld [vmem:[#allocation6 + $0x80] sm:$0xff]
    %v84 = vld [vmem:[#allocation6 + $0x88] sm:$0xff]
    %v85 = vld [vmem:[#allocation6 + $0x90] sm:$0xff]
    %v86 = vld [vmem:[#allocation6 + $0x98] sm:$0xff]
    %v87 = vld [vmem:[#allocation6 + $0xa0] sm:$0xff]
    %v88 = vld [vmem:[#allocation6 + $0xa8] sm:$0xff]
    %v89 = vld [vmem:[#allocation6 + $0xb0] sm:$0xff]
    %v90 = vld [vmem:[#allocation6 + $0xb8] sm:$0xff]
    %v91 = vld [vmem:[#allocation6 + $0xc0] sm:$0xff]
    %v92 = vld [vmem:[#allocation6 + $0xc8] sm:$0xff]
    %v93 = vld [vmem:[#allocation6 + $0xd0] sm:$0xff]
    %v94 = vld [vmem:[#allocation6 + $0xd8] sm:$0xff]
    %v95 = vld [vmem:[#allocation6 + $0xe0] sm:$0xff]
    %v96 = vld [vmem:[#allocation6 + $0xe8] sm:$0xff]
    %v97 = vld [vmem:[#allocation6 + $0xf0] sm:$0xff]
    %v98 = vld [vmem:[#allocation6 + $0xf8] sm:$0xff]
    %v99 = vld [vmem:[#allocation6 + $0x100] sm:$0xff]
    %v100 = vld [vmem:[#allocation6 + $0x108] sm:$0xff]
    %v101 = vld [vmem:[#allocation6 + $0x110] sm:$0xff]
    %v102 = vld [vmem:[#allocation6 + $0x118] sm:$0xff]
    %v103 = vld [vmem:[#allocation6 + $0x120] sm:$0xff]
    %v104 = vld [vmem:[#allocation6 + $0x128] sm:$0xff]
    %v105 = vld [vmem:[#allocation6 + $0x130] sm:$0xff]
    %v106 = vld [vmem:[#allocation6 + $0x138] sm:$0xff]
    %v107 = vld [vmem:[#allocation6 + $0x140] sm:$0xff]
    %v108 = vld [vmem:[#allocation6 + $0x148] sm:$0xff]
    %v109 = vld [vmem:[#allocation6 + $0x150] sm:$0xff]
    %v110 = vld [vmem:[#allocation6 + $0x158] sm:$0xff]
    %v111 = vld [vmem:[#allocation6 + $0x160] sm:$0xff]
    %v112 = vld [vmem:[#allocation6 + $0x168] sm:$0xff]
    %v113 = vld [vmem:[#allocation6 + $0x170] sm:$0xff]
    %v114 = vld [vmem:[#allocation6 + $0x178] sm:$0xff]
    %v115 = vld [vmem:[#allocation6 + $0x180] sm:$0xff]
    %v116 = vld [vmem:[#allocation6 + $0x188] sm:$0xff]
    %v117 = vld [vmem:[#allocation6 + $0x190] sm:$0xff]
    %v118 = vld [vmem:[#allocation6 + $0x198] sm:$0xff]
    %v119 = vld [vmem:[#allocation6 + $0x1a0] sm:$0xff]
    %v120 = vld [vmem:[#allocation6 + $0x1a8] sm:$0xff]
    %v121 = vld [vmem:[#allocation6 + $0x1b0] sm:$0xff]
    %v122 = vld [vmem:[#allocation6 + $0x1b8] sm:$0xff]
    %v123 = vld [vmem:[#allocation6 + $0x1c0] sm:$0xff]
    %v124 = vld [vmem:[#allocation6 + $0x1c8] sm:$0xff]
    %v125 = vld [vmem:[#allocation6 + $0x1d0] sm:$0xff]
    %v126 = vld [vmem:[#allocation6 + $0x1d8] sm:$0xff]
    %v127 = vld [vmem:[#allocation6 + $0x1e0] sm:$0xff]
    %v128 = vld [vmem:[#allocation6 + $0x1e8] sm:$0xff]
    %v129 = vld [vmem:[#allocation6 + $0x1f0] sm:$0xff]
    %v130 = vld [vmem:[#allocation6 + $0x1f8] sm:$0xff]
    %v131 = vld [vmem:[#allocation6 + $0x200] sm:$0xff]
    %v132 = vld [vmem:[#allocation6 + $0x208] sm:$0xff]
    %v133 = vld [vmem:[#allocation6 + $0x210] sm:$0xff]
    %v134 = vld [vmem:[#allocation6 + $0x218] sm:$0xff]
    %v135 = vld [vmem:[#allocation6 + $0x220] sm:$0xff]
    %v136 = vld [vmem:[#allocation6 + $0x228] sm:$0xff]
    %v137 = vld [vmem:[#allocation6 + $0x230] sm:$0xff]
    %v138 = vld [vmem:[#allocation6 + $0x238] sm:$0xff]
    %v139 = vld [vmem:[#allocation6 + $0x240] sm:$0xff]
    %v140 = vld [vmem:[#allocation6 + $0x248] sm:$0xff]
    %v141 = vld [vmem:[#allocation6 + $0x250] sm:$0xff]
    %v142 = vld [vmem:[#allocation6 + $0x258] sm:$0xff]
    %v143 = vld [vmem:[#allocation6 + $0x260] sm:$0xff]
    %v144 = vld [vmem:[#allocation6 + $0x268] sm:$0xff]
    %v145 = vld [vmem:[#allocation6 + $0x270] sm:$0xff]
    %v146 = vld [vmem:[#allocation6 + $0x278] sm:$0xff]
    %v147 = vld [vmem:[#allocation6 + $0x280] sm:$0xff]
    %v148 = vld [vmem:[#allocation6 + $0x288] sm:$0xff]
    %v149 = vld [vmem:[#allocation6 + $0x290] sm:$0xff]
    %v150 = vld [vmem:[#allocation6 + $0x298] sm:$0xff]
    %v151 = vld [vmem:[#allocation6 + $0x2a0] sm:$0xff]
    %v152 = vld [vmem:[#allocation6 + $0x2a8] sm:$0xff]
    %v153 = vld [vmem:[#allocation6 + $0x2b0] sm:$0xff]
    %v154 = vld [vmem:[#allocation6 + $0x2b8] sm:$0xff]
    %v155 = vld [vmem:[#allocation6 + $0x2c0] sm:$0xff]
    %v156 = vld [vmem:[#allocation6 + $0x2c8] sm:$0xff]
    %v157 = vld [vmem:[#allocation6 + $0x2d0] sm:$0xff]
    %v158 = vld [vmem:[#allocation6 + $0x2d8] sm:$0xff]
    %v159 = vld [vmem:[#allocation6 + $0x2e0] sm:$0xff]
    %v160 = vld [vmem:[#allocation6 + $0x2e8] sm:$0xff]
    %v161 = vld [vmem:[#allocation6 + $0x2f0] sm:$0xff]
    %v162 = vld [vmem:[#allocation6 + $0x2f8] sm:$0xff]
    %v163 = vld [vmem:[#allocation6 + $0x300] sm:$0xff]
    %v164 = vld [vmem:[#allocation6 + $0x308] sm:$0xff]
    %v165 = vld [vmem:[#allocation6 + $0x310] sm:$0xff]
    %v166 = vld [vmem:[#allocation6 + $0x318] sm:$0xff]
    %v167 = vld [vmem:[#allocation6 + $0x320] sm:$0xff]
    %v168 = vld [vmem:[#allocation6 + $0x328] sm:$0xff]
    %v169 = vld [vmem:[#allocation6 + $0x330] sm:$0xff]
    %v170 = vld [vmem:[#allocation6 + $0x338] sm:$0xff]
    %v171 = vld [vmem:[#allocation6 + $0x340] sm:$0xff]
    %v172 = vld [vmem:[#allocation6 + $0x348] sm:$0xff]
    %v173 = vld [vmem:[#allocation6 + $0x350] sm:$0xff]
    %v174 = vld [vmem:[#allocation6 + $0x358] sm:$0xff]
    %v175 = vld [vmem:[#allocation6 + $0x360] sm:$0xff]
    %v176 = vld [vmem:[#allocation6 + $0x368] sm:$0xff]
    %v177 = vld [vmem:[#allocation6 + $0x370] sm:$0xff]
    %v178 = vld [vmem:[#allocation6 + $0x378] sm:$0xff]
    %v179 = vld [vmem:[#allocation6 + $0x380] sm:$0xff]
    %v180 = vld [vmem:[#allocation6 + $0x388] sm:$0xff]
    %v181 = vld [vmem:[#allocation6 + $0x390] sm:$0xff]
    %v182 = vld [vmem:[#allocation6 + $0x398] sm:$0xff]
    %v183 = vld [vmem:[#allocation6 + $0x3a0] sm:$0xff]
    %v184 = vld [vmem:[#allocation6 + $0x3a8] sm:$0xff]
    %v185 = vld [vmem:[#allocation6 + $0x3b0] sm:$0xff]
    %v186 = vld [vmem:[#allocation6 + $0x3b8] sm:$0xff]
    %v187 = vld [vmem:[#allocation6 + $0x3c0] sm:$0xff]
    %v188 = vld [vmem:[#allocation6 + $0x3c8] sm:$0xff]
    %v189 = vld [vmem:[#allocation6 + $0x3d0] sm:$0xff]
    %v190 = vld [vmem:[#allocation6 + $0x3d8] sm:$0xff]
    %v191 = vld [vmem:[#allocation6 + $0x3e0] sm:$0xff]
    %v192 = vld [vmem:[#allocation6 + $0x3e8] sm:$0xff]
    %v193 = vld [vmem:[#allocation6 + $0x3f0] sm:$0xff]
    %v194 = vld [vmem:[#allocation6 + $0x3f8] sm:$0xff]
    %v195 = vld [vmem:[#allocation6 + $0x400] sm:$0xff]
    %v196 = vld [vmem:[#allocation6 + $0x408] sm:$0xff]
    %v197 = vld [vmem:[#allocation6 + $0x410] sm:$0xff]
    %v198 = vld [vmem:[#allocation6 + $0x418] sm:$0xff]
    %v199 = vld [vmem:[#allocation6 + $0x420] sm:$0xff]
    %v200 = vld [vmem:[#allocation6 + $0x428] sm:$0xff]
    %v201 = vld [vmem:[#allocation6 + $0x430] sm:$0xff]
    %v202 = vld [vmem:[#allocation6 + $0x438] sm:$0xff]
    %v203 = vld [vmem:[#allocation6 + $0x440] sm:$0xff]
    %v204 = vld [vmem:[#allocation6 + $0x448] sm:$0xff]
    %v205 = vld [vmem:[#allocation6 + $0x450] sm:$0xff]
    %v206 = vld [vmem:[#allocation6 + $0x458] sm:$0xff]
    %v207 = vld [vmem:[#allocation6 + $0x460] sm:$0xff]
    %v208 = vld [vmem:[#allocation6 + $0x468] sm:$0xff]
    %v209 = vld [vmem:[#allocation6 + $0x470] sm:$0xff]
    %v210 = vld [vmem:[#allocation6 + $0x478] sm:$0xff]
    %v211 = vld [vmem:[#allocation6 + $0x480] sm:$0xff]
    %v212 = vld [vmem:[#allocation6 + $0x488] sm:$0xff]
    %v213 = vld [vmem:[#allocation6 + $0x490] sm:$0xff]
    %v214 = vld [vmem:[#allocation6 + $0x498] sm:$0xff]
    %v215 = vld [vmem:[#allocation6 + $0x4a0] sm:$0xff]
    %v216 = vld [vmem:[#allocation6 + $0x4a8] sm:$0xff]
    %v217 = vld [vmem:[#allocation6 + $0x4b0] sm:$0xff]
    %v218 = vld [vmem:[#allocation6 + $0x4b8] sm:$0xff]
    %v219 = vld [vmem:[#allocation6 + $0x4c0] sm:$0xff]
    %v220 = vld [vmem:[#allocation6 + $0x4c8] sm:$0xff]
    %v221 = vld [vmem:[#allocation6 + $0x4d0] sm:$0xff]
    %v222 = vld [vmem:[#allocation6 + $0x4d8] sm:$0xff]
    %v223 = vld [vmem:[#allocation6 + $0x4e0] sm:$0xff]
    %v224 = vld [vmem:[#allocation6 + $0x4e8] sm:$0xff]
    %v225 = vld [vmem:[#allocation6 + $0x4f0] sm:$0xff]
    %v226 = vld [vmem:[#allocation6 + $0x4f8] sm:$0xff]
    %v227 = vld [vmem:[#allocation6 + $0x500] sm:$0xff]
    %v228 = vld [vmem:[#allocation6 + $0x508] sm:$0xff]
    %v229 = vld [vmem:[#allocation6 + $0x510] sm:$0xff]
    %v230 = vld [vmem:[#allocation6 + $0x518] sm:$0xff]
    %v231 = vld [vmem:[#allocation6 + $0x520] sm:$0xff]
    %v232 = vld [vmem:[#allocation6 + $0x528] sm:$0xff]
    %v233 = vld [vmem:[#allocation6 + $0x530] sm:$0xff]
    %v234 = vld [vmem:[#allocation6 + $0x538] sm:$0xff]
    %v235 = vld [vmem:[#allocation6 + $0x540] sm:$0xff]
    %v236 = vld [vmem:[#allocation6 + $0x548] sm:$0xff]
    %v237 = vld [vmem:[#allocation6 + $0x550] sm:$0xff]
    %v238 = vld [vmem:[#allocation6 + $0x558] sm:$0xff]
    %v239 = vld [vmem:[#allocation6 + $0x560] sm:$0xff]
    %v240 = vld [vmem:[#allocation6 + $0x568] sm:$0xff]
    %v241 = vld [vmem:[#allocation6 + $0x570] sm:$0xff]
    %v242 = vld [vmem:[#allocation6 + $0x578] sm:$0xff]
    %v243 = vld [vmem:[#allocation6 + $0x580] sm:$0xff]
    %v244 = vld [vmem:[#allocation6 + $0x588] sm:$0xff]
    %v245 = vld [vmem:[#allocation6 + $0x590] sm:$0xff]
    %v246 = vld [vmem:[#allocation6 + $0x598] sm:$0xff]
    %v247 = vld [vmem:[#allocation6 + $0x5a0] sm:$0xff]
    %v248 = vld [vmem:[#allocation6 + $0x5a8] sm:$0xff]
    %v249 = vld [vmem:[#allocation6 + $0x5b0] sm:$0xff]
    %v250 = vld [vmem:[#allocation6 + $0x5b8] sm:$0xff]
    %v251 = vld [vmem:[#allocation6 + $0x5c0] sm:$0xff]
    %v252 = vld [vmem:[#allocation6 + $0x5c8] sm:$0xff]
    %v253 = vld [vmem:[#allocation6 + $0x5d0] sm:$0xff]
    %v254 = vld [vmem:[#allocation6 + $0x5d8] sm:$0xff]
    %v255 = vld [vmem:[#allocation6 + $0x5e0] sm:$0xff]
    %v256 = vld [vmem:[#allocation6 + $0x5e8] sm:$0xff]
    %v257 = vld [vmem:[#allocation6 + $0x5f0] sm:$0xff]
    %v258 = vld [vmem:[#allocation6 + $0x5f8] sm:$0xff]
    %v259 = vld [vmem:[#allocation6 + $0x600] sm:$0xff]
    %v260 = vld [vmem:[#allocation6 + $0x608] sm:$0xff]
    %v261 = vld [vmem:[#allocation6 + $0x610] sm:$0xff]
    %v262 = vld [vmem:[#allocation6 + $0x618] sm:$0xff]
    %v263 = vld [vmem:[#allocation6 + $0x620] sm:$0xff]
    %v264 = vld [vmem:[#allocation6 + $0x628] sm:$0xff]
    %v265 = vld [vmem:[#allocation6 + $0x630] sm:$0xff]
    %v266 = vld [vmem:[#allocation6 + $0x638] sm:$0xff]
    %v267 = vld [vmem:[#allocation6 + $0x640] sm:$0xff]
    %v268 = vld [vmem:[#allocation6 + $0x648] sm:$0xff]
    %v269 = vld [vmem:[#allocation6 + $0x650] sm:$0xff]
    %v270 = vld [vmem:[#allocation6 + $0x658] sm:$0xff]
    %v271 = vld [vmem:[#allocation6 + $0x660] sm:$0xff]
    %v272 = vld [vmem:[#allocation6 + $0x668] sm:$0xff]
    %v273 = vld [vmem:[#allocation6 + $0x670] sm:$0xff]
    %v274 = vld [vmem:[#allocation6 + $0x678] sm:$0xff]
    %v275 = vld [vmem:[#allocation6 + $0x680] sm:$0xff]
    %v276 = vld [vmem:[#allocation6 + $0x688] sm:$0xff]
    %v277 = vld [vmem:[#allocation6 + $0x690] sm:$0xff]
    %v278 = vld [vmem:[#allocation6 + $0x698] sm:$0xff]
    %v279 = vld [vmem:[#allocation6 + $0x6a0] sm:$0xff]
    %v280 = vld [vmem:[#allocation6 + $0x6a8] sm:$0xff]
    %v281 = vld [vmem:[#allocation6 + $0x6b0] sm:$0xff]
    %v282 = vld [vmem:[#allocation6 + $0x6b8] sm:$0xff]
    %v283 = vld [vmem:[#allocation6 + $0x6c0] sm:$0xff]
    %v284 = vld [vmem:[#allocation6 + $0x6c8] sm:$0xff]
    %v285 = vld [vmem:[#allocation6 + $0x6d0] sm:$0xff]
    %v286 = vld [vmem:[#allocation6 + $0x6d8] sm:$0xff]
    %v287 = vld [vmem:[#allocation6 + $0x6e0] sm:$0xff]
    %v288 = vld [vmem:[#allocation6 + $0x6e8] sm:$0xff]
    %v289 = vld [vmem:[#allocation6 + $0x6f0] sm:$0xff]
    %v290 = vld [vmem:[#allocation6 + $0x6f8] sm:$0xff]
    %v291 = vld [vmem:[#allocation6 + $0x700] sm:$0xff]
    %v292 = vld [vmem:[#allocation6 + $0x708] sm:$0xff]
    %v293 = vld [vmem:[#allocation6 + $0x710] sm:$0xff]
    %v294 = vld [vmem:[#allocation6 + $0x718] sm:$0xff]
    %v295 = vld [vmem:[#allocation6 + $0x720] sm:$0xff]
    %v296 = vld [vmem:[#allocation6 + $0x728] sm:$0xff]
    %v297 = vld [vmem:[#allocation6 + $0x730] sm:$0xff]
    %v298 = vld [vmem:[#allocation6 + $0x738] sm:$0xff]
    %v299 = vld [vmem:[#allocation6 + $0x740] sm:$0xff]
    %v300 = vld [vmem:[#allocation6 + $0x748] sm:$0xff]
    %v301 = vld [vmem:[#allocation6 + $0x750] sm:$0xff]
    %v302 = vld [vmem:[#allocation6 + $0x758] sm:$0xff]
    %v303 = vld [vmem:[#allocation6 + $0x760] sm:$0xff]
    %v304 = vld [vmem:[#allocation6 + $0x768] sm:$0xff]
    %v305 = vld [vmem:[#allocation6 + $0x770] sm:$0xff]
    %v306 = vld [vmem:[#allocation6 + $0x778] sm:$0xff]
    %v307 = vld [vmem:[#allocation6 + $0x780] sm:$0xff]
    %v308 = vld [vmem:[#allocation6 + $0x788] sm:$0xff]
    %v309 = vld [vmem:[#allocation6 + $0x790] sm:$0xff]
    %v310 = vld [vmem:[#allocation6 + $0x798] sm:$0xff]
    %v311 = vld [vmem:[#allocation6 + $0x7a0] sm:$0xff]
    %v312 = vld [vmem:[#allocation6 + $0x7a8] sm:$0xff]
    %v313 = vld [vmem:[#allocation6 + $0x7b0] sm:$0xff]
    %v314 = vld [vmem:[#allocation6 + $0x7b8] sm:$0xff]
    %v315 = vld [vmem:[#allocation6 + $0x7c0] sm:$0xff]
    %v316 = vld [vmem:[#allocation6 + $0x7c8] sm:$0xff]
    %v317 = vld [vmem:[#allocation6 + $0x7d0] sm:$0xff]
    %v318 = vld [vmem:[#allocation6 + $0x7d8] sm:$0xff]
    %v319 = vld [vmem:[#allocation6 + $0x7e0] sm:$0xff]
    %v320 = vld [vmem:[#allocation6 + $0x7e8] sm:$0xff]
    %v321 = vld [vmem:[#allocation6 + $0x7f0] sm:$0xff]
    %v322 = vld [vmem:[#allocation6 + $0x7f8] sm:$0xff]
    %v323 = vld [vmem:[%s2] sm:$0x3]
    %v325 = vlaneseq
    %v326 = vshrl.u32 %v325, 7
    %v327 = vsub.s32 0, %v326
    %v328 = vrot.slane %v323, %v327
    %v329 = vlaneseq
    %v330 = vshrl.u32 %v329, 7
    %v331 = vsub.s32 1, %v330
    %v332 = vrot.slane %v323, %v331
    %v351 = vunpack.c.l.b16 %v51
    %v352 = vunpack.c.h.b16 %v51
    %v353 = vunpack.c.l.b16 %v52
    %v354 = vunpack.c.h.b16 %v52
    %v355 = vunpack.c.l.b16 %v53
    %v356 = vunpack.c.h.b16 %v53
    %v357 = vunpack.c.l.b16 %v54
    %v358 = vunpack.c.h.b16 %v54
    %v359 = vunpack.c.l.b16 %v55
    %v360 = vunpack.c.h.b16 %v55
    %v361 = vunpack.c.l.b16 %v56
    %v362 = vunpack.c.h.b16 %v56
    %v363 = vunpack.c.l.b16 %v57
    %v364 = vunpack.c.h.b16 %v57
    %v365 = vunpack.c.l.b16 %v58
    %v366 = vunpack.c.h.b16 %v58
    %v367 = vunpack.c.l.b16 %v59
    %v368 = vunpack.c.h.b16 %v59
    %v369 = vunpack.c.l.b16 %v60
    %v370 = vunpack.c.h.b16 %v60
    %v371 = vunpack.c.l.b16 %v61
    %v372 = vunpack.c.h.b16 %v61
    %v373 = vunpack.c.l.b16 %v62
    %v374 = vunpack.c.h.b16 %v62
    %v375 = vunpack.c.l.b16 %v63
    %v376 = vunpack.c.h.b16 %v63
    %v377 = vunpack.c.l.b16 %v64
    %v378 = vunpack.c.h.b16 %v64
    %v379 = vunpack.c.l.b16 %v65
    %v380 = vunpack.c.h.b16 %v65
    %v381 = vunpack.c.l.b16 %v66
    %v382 = vunpack.c.h.b16 %v66
    %v383 = vpack.c.b16 %v367, %v351
    %v384 = vpack.c.b16 %v368, %v352
    %v385 = vpack.c.b16 %v369, %v353
    %v386 = vpack.c.b16 %v370, %v354
    %v387 = vpack.c.b16 %v371, %v355
    %v388 = vpack.c.b16 %v372, %v356
    %v389 = vpack.c.b16 %v373, %v357
    %v390 = vpack.c.b16 %v374, %v358
    %v391 = vpack.c.b16 %v375, %v359
    %v392 = vpack.c.b16 %v376, %v360
    %v393 = vpack.c.b16 %v377, %v361
    %v394 = vpack.c.b16 %v378, %v362
    %v395 = vpack.c.b16 %v379, %v363
    %v396 = vpack.c.b16 %v380, %v364
    %v397 = vpack.c.b16 %v381, %v365
    %v398 = vpack.c.b16 %v382, %v366
    %v671 = vunpack.c.l.b16 %v67
    %v672 = vunpack.c.h.b16 %v67
    %v673 = vunpack.c.l.b16 %v68
    %v674 = vunpack.c.h.b16 %v68
    %v675 = vunpack.c.l.b16 %v69
    %v676 = vunpack.c.h.b16 %v69
    %v677 = vunpack.c.l.b16 %v70
    %v678 = vunpack.c.h.b16 %v70
    %v679 = vunpack.c.l.b16 %v71
    %v680 = vunpack.c.h.b16 %v71
    %v681 = vunpack.c.l.b16 %v72
    %v682 = vunpack.c.h.b16 %v72
    %v683 = vunpack.c.l.b16 %v73
    %v684 = vunpack.c.h.b16 %v73
    %v685 = vunpack.c.l.b16 %v74
    %v686 = vunpack.c.h.b16 %v74
    %v687 = vunpack.c.l.b16 %v75
    %v688 = vunpack.c.h.b16 %v75
    %v689 = vunpack.c.l.b16 %v76
    %v690 = vunpack.c.h.b16 %v76
    %v691 = vunpack.c.l.b16 %v77
    %v692 = vunpack.c.h.b16 %v77
    %v693 = vunpack.c.l.b16 %v78
    %v694 = vunpack.c.h.b16 %v78
    %v695 = vunpack.c.l.b16 %v79
    %v696 = vunpack.c.h.b16 %v79
    %v697 = vunpack.c.l.b16 %v80
    %v698 = vunpack.c.h.b16 %v80
    %v699 = vunpack.c.l.b16 %v81
    %v700 = vunpack.c.h.b16 %v81
    %v701 = vunpack.c.l.b16 %v82
    %v702 = vunpack.c.h.b16 %v82
    %v703 = vunpack.c.l.b16 %v83
    %v704 = vunpack.c.h.b16 %v83
    %v705 = vunpack.c.l.b16 %v84
    %v706 = vunpack.c.h.b16 %v84
    %v707 = vunpack.c.l.b16 %v85
    %v708 = vunpack.c.h.b16 %v85
    %v709 = vunpack.c.l.b16 %v86
    %v710 = vunpack.c.h.b16 %v86
    %v711 = vunpack.c.l.b16 %v87
    %v712 = vunpack.c.h.b16 %v87
    %v713 = vunpack.c.l.b16 %v88
    %v714 = vunpack.c.h.b16 %v88
    %v715 = vunpack.c.l.b16 %v89
    %v716 = vunpack.c.h.b16 %v89
    %v717 = vunpack.c.l.b16 %v90
    %v718 = vunpack.c.h.b16 %v90
    %v719 = vunpack.c.l.b16 %v91
    %v720 = vunpack.c.h.b16 %v91
    %v721 = vunpack.c.l.b16 %v92
    %v722 = vunpack.c.h.b16 %v92
    %v723 = vunpack.c.l.b16 %v93
    %v724 = vunpack.c.h.b16 %v93
    %v725 = vunpack.c.l.b16 %v94
    %v726 = vunpack.c.h.b16 %v94
    %v727 = vunpack.c.l.b16 %v95
    %v728 = vunpack.c.h.b16 %v95
    %v729 = vunpack.c.l.b16 %v96
    %v730 = vunpack.c.h.b16 %v96
    %v731 = vunpack.c.l.b16 %v97
    %v732 = vunpack.c.h.b16 %v97
    %v733 = vunpack.c.l.b16 %v98
    %v734 = vunpack.c.h.b16 %v98
    %v735 = vunpack.c.l.b16 %v99
    %v736 = vunpack.c.h.b16 %v99
    %v737 = vunpack.c.l.b16 %v100
    %v738 = vunpack.c.h.b16 %v100
    %v739 = vunpack.c.l.b16 %v101
    %v740 = vunpack.c.h.b16 %v101
    %v741 = vunpack.c.l.b16 %v102
    %v742 = vunpack.c.h.b16 %v102
    %v743 = vunpack.c.l.b16 %v103
    %v744 = vunpack.c.h.b16 %v103
    %v745 = vunpack.c.l.b16 %v104
    %v746 = vunpack.c.h.b16 %v104
    %v747 = vunpack.c.l.b16 %v105
    %v748 = vunpack.c.h.b16 %v105
    %v749 = vunpack.c.l.b16 %v106
    %v750 = vunpack.c.h.b16 %v106
    %v751 = vunpack.c.l.b16 %v107
    %v752 = vunpack.c.h.b16 %v107
    %v753 = vunpack.c.l.b16 %v108
    %v754 = vunpack.c.h.b16 %v108
    %v755 = vunpack.c.l.b16 %v109
    %v756 = vunpack.c.h.b16 %v109
    %v757 = vunpack.c.l.b16 %v110
    %v758 = vunpack.c.h.b16 %v110
    %v759 = vunpack.c.l.b16 %v111
    %v760 = vunpack.c.h.b16 %v111
    %v761 = vunpack.c.l.b16 %v112
    %v762 = vunpack.c.h.b16 %v112
    %v763 = vunpack.c.l.b16 %v113
    %v764 = vunpack.c.h.b16 %v113
    %v765 = vunpack.c.l.b16 %v114
    %v766 = vunpack.c.h.b16 %v114
    %v767 = vunpack.c.l.b16 %v115
    %v768 = vunpack.c.h.b16 %v115
    %v769 = vunpack.c.l.b16 %v116
    %v770 = vunpack.c.h.b16 %v116
    %v771 = vunpack.c.l.b16 %v117
    %v772 = vunpack.c.h.b16 %v117
    %v773 = vunpack.c.l.b16 %v118
    %v774 = vunpack.c.h.b16 %v118
    %v775 = vunpack.c.l.b16 %v119
    %v776 = vunpack.c.h.b16 %v119
    %v777 = vunpack.c.l.b16 %v120
    %v778 = vunpack.c.h.b16 %v120
    %v779 = vunpack.c.l.b16 %v121
    %v780 = vunpack.c.h.b16 %v121
    %v781 = vunpack.c.l.b16 %v122
    %v782 = vunpack.c.h.b16 %v122
    %v783 = vunpack.c.l.b16 %v123
    %v784 = vunpack.c.h.b16 %v123
    %v785 = vunpack.c.l.b16 %v124
    %v786 = vunpack.c.h.b16 %v124
    %v787 = vunpack.c.l.b16 %v125
    %v788 = vunpack.c.h.b16 %v125
    %v789 = vunpack.c.l.b16 %v126
    %v790 = vunpack.c.h.b16 %v126
    %v791 = vunpack.c.l.b16 %v127
    %v792 = vunpack.c.h.b16 %v127
    %v793 = vunpack.c.l.b16 %v128
    %v794 = vunpack.c.h.b16 %v128
    %v795 = vunpack.c.l.b16 %v129
    %v796 = vunpack.c.h.b16 %v129
    %v797 = vunpack.c.l.b16 %v130
    %v798 = vunpack.c.h.b16 %v130
    %v799 = vunpack.c.l.b16 %v131
    %v800 = vunpack.c.h.b16 %v131
    %v801 = vunpack.c.l.b16 %v132
    %v802 = vunpack.c.h.b16 %v132
    %v803 = vunpack.c.l.b16 %v133
    %v804 = vunpack.c.h.b16 %v133
    %v805 = vunpack.c.l.b16 %v134
    %v806 = vunpack.c.h.b16 %v134
    %v807 = vunpack.c.l.b16 %v135
    %v808 = vunpack.c.h.b16 %v135
    %v809 = vunpack.c.l.b16 %v136
    %v810 = vunpack.c.h.b16 %v136
    %v811 = vunpack.c.l.b16 %v137
    %v812 = vunpack.c.h.b16 %v137
    %v813 = vunpack.c.l.b16 %v138
    %v814 = vunpack.c.h.b16 %v138
    %v815 = vunpack.c.l.b16 %v139
    %v816 = vunpack.c.h.b16 %v139
    %v817 = vunpack.c.l.b16 %v140
    %v818 = vunpack.c.h.b16 %v140
    %v819 = vunpack.c.l.b16 %v141
    %v820 = vunpack.c.h.b16 %v141
    %v821 = vunpack.c.l.b16 %v142
    %v822 = vunpack.c.h.b16 %v142
    %v823 = vunpack.c.l.b16 %v143
    %v824 = vunpack.c.h.b16 %v143
    %v825 = vunpack.c.l.b16 %v144
    %v826 = vunpack.c.h.b16 %v144
    %v827 = vunpack.c.l.b16 %v145
    %v828 = vunpack.c.h.b16 %v145
    %v829 = vunpack.c.l.b16 %v146
    %v830 = vunpack.c.h.b16 %v146
    %v831 = vunpack.c.l.b16 %v147
    %v832 = vunpack.c.h.b16 %v147
    %v833 = vunpack.c.l.b16 %v148
    %v834 = vunpack.c.h.b16 %v148
    %v835 = vunpack.c.l.b16 %v149
    %v836 = vunpack.c.h.b16 %v149
    %v837 = vunpack.c.l.b16 %v150
    %v838 = vunpack.c.h.b16 %v150
    %v839 = vunpack.c.l.b16 %v151
    %v840 = vunpack.c.h.b16 %v151
    %v841 = vunpack.c.l.b16 %v152
    %v842 = vunpack.c.h.b16 %v152
    %v843 = vunpack.c.l.b16 %v153
    %v844 = vunpack.c.h.b16 %v153
    %v845 = vunpack.c.l.b16 %v154
    %v846 = vunpack.c.h.b16 %v154
    %v847 = vunpack.c.l.b16 %v155
    %v848 = vunpack.c.h.b16 %v155
    %v849 = vunpack.c.l.b16 %v156
    %v850 = vunpack.c.h.b16 %v156
    %v851 = vunpack.c.l.b16 %v157
    %v852 = vunpack.c.h.b16 %v157
    %v853 = vunpack.c.l.b16 %v158
    %v854 = vunpack.c.h.b16 %v158
    %v855 = vunpack.c.l.b16 %v159
    %v856 = vunpack.c.h.b16 %v159
    %v857 = vunpack.c.l.b16 %v160
    %v858 = vunpack.c.h.b16 %v160
    %v859 = vunpack.c.l.b16 %v161
    %v860 = vunpack.c.h.b16 %v161
    %v861 = vunpack.c.l.b16 %v162
    %v862 = vunpack.c.h.b16 %v162
    %v863 = vunpack.c.l.b16 %v163
    %v864 = vunpack.c.h.b16 %v163
    %v865 = vunpack.c.l.b16 %v164
    %v866 = vunpack.c.h.b16 %v164
    %v867 = vunpack.c.l.b16 %v165
    %v868 = vunpack.c.h.b16 %v165
    %v869 = vunpack.c.l.b16 %v166
    %v870 = vunpack.c.h.b16 %v166
    %v871 = vunpack.c.l.b16 %v167
    %v872 = vunpack.c.h.b16 %v167
    %v873 = vunpack.c.l.b16 %v168
    %v874 = vunpack.c.h.b16 %v168
    %v875 = vunpack.c.l.b16 %v169
    %v876 = vunpack.c.h.b16 %v169
    %v877 = vunpack.c.l.b16 %v170
    %v878 = vunpack.c.h.b16 %v170
    %v879 = vunpack.c.l.b16 %v171
    %v880 = vunpack.c.h.b16 %v171
    %v881 = vunpack.c.l.b16 %v172
    %v882 = vunpack.c.h.b16 %v172
    %v883 = vunpack.c.l.b16 %v173
    %v884 = vunpack.c.h.b16 %v173
    %v885 = vunpack.c.l.b16 %v174
    %v886 = vunpack.c.h.b16 %v174
    %v887 = vunpack.c.l.b16 %v175
    %v888 = vunpack.c.h.b16 %v175
    %v889 = vunpack.c.l.b16 %v176
    %v890 = vunpack.c.h.b16 %v176
    %v891 = vunpack.c.l.b16 %v177
    %v892 = vunpack.c.h.b16 %v177
    %v893 = vunpack.c.l.b16 %v178
    %v894 = vunpack.c.h.b16 %v178
    %v895 = vunpack.c.l.b16 %v179
    %v896 = vunpack.c.h.b16 %v179
    %v897 = vunpack.c.l.b16 %v180
    %v898 = vunpack.c.h.b16 %v180
    %v899 = vunpack.c.l.b16 %v181
    %v900 = vunpack.c.h.b16 %v181
    %v901 = vunpack.c.l.b16 %v182
    %v902 = vunpack.c.h.b16 %v182
    %v903 = vunpack.c.l.b16 %v183
    %v904 = vunpack.c.h.b16 %v183
    %v905 = vunpack.c.l.b16 %v184
    %v906 = vunpack.c.h.b16 %v184
    %v907 = vunpack.c.l.b16 %v185
    %v908 = vunpack.c.h.b16 %v185
    %v909 = vunpack.c.l.b16 %v186
    %v910 = vunpack.c.h.b16 %v186
    %v911 = vunpack.c.l.b16 %v187
    %v912 = vunpack.c.h.b16 %v187
    %v913 = vunpack.c.l.b16 %v188
    %v914 = vunpack.c.h.b16 %v188
    %v915 = vunpack.c.l.b16 %v189
    %v916 = vunpack.c.h.b16 %v189
    %v917 = vunpack.c.l.b16 %v190
    %v918 = vunpack.c.h.b16 %v190
    %v919 = vunpack.c.l.b16 %v191
    %v920 = vunpack.c.h.b16 %v191
    %v921 = vunpack.c.l.b16 %v192
    %v922 = vunpack.c.h.b16 %v192
    %v923 = vunpack.c.l.b16 %v193
    %v924 = vunpack.c.h.b16 %v193
    %v925 = vunpack.c.l.b16 %v194
    %v926 = vunpack.c.h.b16 %v194
    %v927 = vunpack.c.l.b16 %v195
    %v928 = vunpack.c.h.b16 %v195
    %v929 = vunpack.c.l.b16 %v196
    %v930 = vunpack.c.h.b16 %v196
    %v931 = vunpack.c.l.b16 %v197
    %v932 = vunpack.c.h.b16 %v197
    %v933 = vunpack.c.l.b16 %v198
    %v934 = vunpack.c.h.b16 %v198
    %v935 = vunpack.c.l.b16 %v199
    %v936 = vunpack.c.h.b16 %v199
    %v937 = vunpack.c.l.b16 %v200
    %v938 = vunpack.c.h.b16 %v200
    %v939 = vunpack.c.l.b16 %v201
    %v940 = vunpack.c.h.b16 %v201
    %v941 = vunpack.c.l.b16 %v202
    %v942 = vunpack.c.h.b16 %v202
    %v943 = vunpack.c.l.b16 %v203
    %v944 = vunpack.c.h.b16 %v203
    %v945 = vunpack.c.l.b16 %v204
    %v946 = vunpack.c.h.b16 %v204
    %v947 = vunpack.c.l.b16 %v205
    %v948 = vunpack.c.h.b16 %v205
    %v949 = vunpack.c.l.b16 %v206
    %v950 = vunpack.c.h.b16 %v206
    %v951 = vunpack.c.l.b16 %v207
    %v952 = vunpack.c.h.b16 %v207
    %v953 = vunpack.c.l.b16 %v208
    %v954 = vunpack.c.h.b16 %v208
    %v955 = vunpack.c.l.b16 %v209
    %v956 = vunpack.c.h.b16 %v209
    %v957 = vunpack.c.l.b16 %v210
    %v958 = vunpack.c.h.b16 %v210
    %v959 = vunpack.c.l.b16 %v211
    %v960 = vunpack.c.h.b16 %v211
    %v961 = vunpack.c.l.b16 %v212
    %v962 = vunpack.c.h.b16 %v212
    %v963 = vunpack.c.l.b16 %v213
    %v964 = vunpack.c.h.b16 %v213
    %v965 = vunpack.c.l.b16 %v214
    %v966 = vunpack.c.h.b16 %v214
    %v967 = vunpack.c.l.b16 %v215
    %v968 = vunpack.c.h.b16 %v215
    %v969 = vunpack.c.l.b16 %v216
    %v970 = vunpack.c.h.b16 %v216
    %v971 = vunpack.c.l.b16 %v217
    %v972 = vunpack.c.h.b16 %v217
    %v973 = vunpack.c.l.b16 %v218
    %v974 = vunpack.c.h.b16 %v218
    %v975 = vunpack.c.l.b16 %v219
    %v976 = vunpack.c.h.b16 %v219
    %v977 = vunpack.c.l.b16 %v220
    %v978 = vunpack.c.h.b16 %v220
    %v979 = vunpack.c.l.b16 %v221
    %v980 = vunpack.c.h.b16 %v221
    %v981 = vunpack.c.l.b16 %v222
    %v982 = vunpack.c.h.b16 %v222
    %v983 = vunpack.c.l.b16 %v223
    %v984 = vunpack.c.h.b16 %v223
    %v985 = vunpack.c.l.b16 %v224
    %v986 = vunpack.c.h.b16 %v224
    %v987 = vunpack.c.l.b16 %v225
    %v988 = vunpack.c.h.b16 %v225
    %v989 = vunpack.c.l.b16 %v226
    %v990 = vunpack.c.h.b16 %v226
    %v991 = vunpack.c.l.b16 %v227
    %v992 = vunpack.c.h.b16 %v227
    %v993 = vunpack.c.l.b16 %v228
    %v994 = vunpack.c.h.b16 %v228
    %v995 = vunpack.c.l.b16 %v229
    %v996 = vunpack.c.h.b16 %v229
    %v997 = vunpack.c.l.b16 %v230
    %v998 = vunpack.c.h.b16 %v230
    %v999 = vunpack.c.l.b16 %v231
    %v1000 = vunpack.c.h.b16 %v231
    %v1001 = vunpack.c.l.b16 %v232
    %v1002 = vunpack.c.h.b16 %v232
    %v1003 = vunpack.c.l.b16 %v233
    %v1004 = vunpack.c.h.b16 %v233
    %v1005 = vunpack.c.l.b16 %v234
    %v1006 = vunpack.c.h.b16 %v234
    %v1007 = vunpack.c.l.b16 %v235
    %v1008 = vunpack.c.h.b16 %v235
    %v1009 = vunpack.c.l.b16 %v236
    %v1010 = vunpack.c.h.b16 %v236
    %v1011 = vunpack.c.l.b16 %v237
    %v1012 = vunpack.c.h.b16 %v237
    %v1013 = vunpack.c.l.b16 %v238
    %v1014 = vunpack.c.h.b16 %v238
    %v1015 = vunpack.c.l.b16 %v239
    %v1016 = vunpack.c.h.b16 %v239
    %v1017 = vunpack.c.l.b16 %v240
    %v1018 = vunpack.c.h.b16 %v240
    %v1019 = vunpack.c.l.b16 %v241
    %v1020 = vunpack.c.h.b16 %v241
    %v1021 = vunpack.c.l.b16 %v242
    %v1022 = vunpack.c.h.b16 %v242
    %v1023 = vunpack.c.l.b16 %v243
    %v1024 = vunpack.c.h.b16 %v243
    %v1025 = vunpack.c.l.b16 %v244
    %v1026 = vunpack.c.h.b16 %v244
    %v1027 = vunpack.c.l.b16 %v245
    %v1028 = vunpack.c.h.b16 %v245
    %v1029 = vunpack.c.l.b16 %v246
    %v1030 = vunpack.c.h.b16 %v246
    %v1031 = vunpack.c.l.b16 %v247
    %v1032 = vunpack.c.h.b16 %v247
    %v1033 = vunpack.c.l.b16 %v248
    %v1034 = vunpack.c.h.b16 %v248
    %v1035 = vunpack.c.l.b16 %v249
    %v1036 = vunpack.c.h.b16 %v249
    %v1037 = vunpack.c.l.b16 %v250
    %v1038 = vunpack.c.h.b16 %v250
    %v1039 = vunpack.c.l.b16 %v251
    %v1040 = vunpack.c.h.b16 %v251
    %v1041 = vunpack.c.l.b16 %v252
    %v1042 = vunpack.c.h.b16 %v252
    %v1043 = vunpack.c.l.b16 %v253
    %v1044 = vunpack.c.h.b16 %v253
    %v1045 = vunpack.c.l.b16 %v254
    %v1046 = vunpack.c.h.b16 %v254
    %v1047 = vunpack.c.l.b16 %v255
    %v1048 = vunpack.c.h.b16 %v255
    %v1049 = vunpack.c.l.b16 %v256
    %v1050 = vunpack.c.h.b16 %v256
    %v1051 = vunpack.c.l.b16 %v257
    %v1052 = vunpack.c.h.b16 %v257
    %v1053 = vunpack.c.l.b16 %v258
    %v1054 = vunpack.c.h.b16 %v258
    %v1055 = vunpack.c.l.b16 %v259
    %v1056 = vunpack.c.h.b16 %v259
    %v1057 = vunpack.c.l.b16 %v260
    %v1058 = vunpack.c.h.b16 %v260
    %v1059 = vunpack.c.l.b16 %v261
    %v1060 = vunpack.c.h.b16 %v261
    %v1061 = vunpack.c.l.b16 %v262
    %v1062 = vunpack.c.h.b16 %v262
    %v1063 = vunpack.c.l.b16 %v263
    %v1064 = vunpack.c.h.b16 %v263
    %v1065 = vunpack.c.l.b16 %v264
    %v1066 = vunpack.c.h.b16 %v264
    %v1067 = vunpack.c.l.b16 %v265
    %v1068 = vunpack.c.h.b16 %v265
    %v1069 = vunpack.c.l.b16 %v266
    %v1070 = vunpack.c.h.b16 %v266
    %v1071 = vunpack.c.l.b16 %v267
    %v1072 = vunpack.c.h.b16 %v267
    %v1073 = vunpack.c.l.b16 %v268
    %v1074 = vunpack.c.h.b16 %v268
    %v1075 = vunpack.c.l.b16 %v269
    %v1076 = vunpack.c.h.b16 %v269
    %v1077 = vunpack.c.l.b16 %v270
    %v1078 = vunpack.c.h.b16 %v270
    %v1079 = vunpack.c.l.b16 %v271
    %v1080 = vunpack.c.h.b16 %v271
    %v1081 = vunpack.c.l.b16 %v272
    %v1082 = vunpack.c.h.b16 %v272
    %v1083 = vunpack.c.l.b16 %v273
    %v1084 = vunpack.c.h.b16 %v273
    %v1085 = vunpack.c.l.b16 %v274
    %v1086 = vunpack.c.h.b16 %v274
    %v1087 = vunpack.c.l.b16 %v275
    %v1088 = vunpack.c.h.b16 %v275
    %v1089 = vunpack.c.l.b16 %v276
    %v1090 = vunpack.c.h.b16 %v276
    %v1091 = vunpack.c.l.b16 %v277
    %v1092 = vunpack.c.h.b16 %v277
    %v1093 = vunpack.c.l.b16 %v278
    %v1094 = vunpack.c.h.b16 %v278
    %v1095 = vunpack.c.l.b16 %v279
    %v1096 = vunpack.c.h.b16 %v279
    %v1097 = vunpack.c.l.b16 %v280
    %v1098 = vunpack.c.h.b16 %v280
    %v1099 = vunpack.c.l.b16 %v281
    %v1100 = vunpack.c.h.b16 %v281
    %v1101 = vunpack.c.l.b16 %v282
    %v1102 = vunpack.c.h.b16 %v282
    %v1103 = vunpack.c.l.b16 %v283
    %v1104 = vunpack.c.h.b16 %v283
    %v1105 = vunpack.c.l.b16 %v284
    %v1106 = vunpack.c.h.b16 %v284
    %v1107 = vunpack.c.l.b16 %v285
    %v1108 = vunpack.c.h.b16 %v285
    %v1109 = vunpack.c.l.b16 %v286
    %v1110 = vunpack.c.h.b16 %v286
    %v1111 = vunpack.c.l.b16 %v287
    %v1112 = vunpack.c.h.b16 %v287
    %v1113 = vunpack.c.l.b16 %v288
    %v1114 = vunpack.c.h.b16 %v288
    %v1115 = vunpack.c.l.b16 %v289
    %v1116 = vunpack.c.h.b16 %v289
    %v1117 = vunpack.c.l.b16 %v290
    %v1118 = vunpack.c.h.b16 %v290
    %v1119 = vunpack.c.l.b16 %v291
    %v1120 = vunpack.c.h.b16 %v291
    %v1121 = vunpack.c.l.b16 %v292
    %v1122 = vunpack.c.h.b16 %v292
    %v1123 = vunpack.c.l.b16 %v293
    %v1124 = vunpack.c.h.b16 %v293
    %v1125 = vunpack.c.l.b16 %v294
    %v1126 = vunpack.c.h.b16 %v294
    %v1127 = vunpack.c.l.b16 %v295
    %v1128 = vunpack.c.h.b16 %v295
    %v1129 = vunpack.c.l.b16 %v296
    %v1130 = vunpack.c.h.b16 %v296
    %v1131 = vunpack.c.l.b16 %v297
    %v1132 = vunpack.c.h.b16 %v297
    %v1133 = vunpack.c.l.b16 %v298
    %v1134 = vunpack.c.h.b16 %v298
    %v1135 = vunpack.c.l.b16 %v299
    %v1136 = vunpack.c.h.b16 %v299
    %v1137 = vunpack.c.l.b16 %v300
    %v1138 = vunpack.c.h.b16 %v300
    %v1139 = vunpack.c.l.b16 %v301
    %v1140 = vunpack.c.h.b16 %v301
    %v1141 = vunpack.c.l.b16 %v302
    %v1142 = vunpack.c.h.b16 %v302
    %v1143 = vunpack.c.l.b16 %v303
    %v1144 = vunpack.c.h.b16 %v303
    %v1145 = vunpack.c.l.b16 %v304
    %v1146 = vunpack.c.h.b16 %v304
    %v1147 = vunpack.c.l.b16 %v305
    %v1148 = vunpack.c.h.b16 %v305
    %v1149 = vunpack.c.l.b16 %v306
    %v1150 = vunpack.c.h.b16 %v306
    %v1151 = vunpack.c.l.b16 %v307
    %v1152 = vunpack.c.h.b16 %v307
    %v1153 = vunpack.c.l.b16 %v308
    %v1154 = vunpack.c.h.b16 %v308
    %v1155 = vunpack.c.l.b16 %v309
    %v1156 = vunpack.c.h.b16 %v309
    %v1157 = vunpack.c.l.b16 %v310
    %v1158 = vunpack.c.h.b16 %v310
    %v1159 = vunpack.c.l.b16 %v311
    %v1160 = vunpack.c.h.b16 %v311
    %v1161 = vunpack.c.l.b16 %v312
    %v1162 = vunpack.c.h.b16 %v312
    %v1163 = vunpack.c.l.b16 %v313
    %v1164 = vunpack.c.h.b16 %v313
    %v1165 = vunpack.c.l.b16 %v314
    %v1166 = vunpack.c.h.b16 %v314
    %v1167 = vunpack.c.l.b16 %v315
    %v1168 = vunpack.c.h.b16 %v315
    %v1169 = vunpack.c.l.b16 %v316
    %v1170 = vunpack.c.h.b16 %v316
    %v1171 = vunpack.c.l.b16 %v317
    %v1172 = vunpack.c.h.b16 %v317
    %v1173 = vunpack.c.l.b16 %v318
    %v1174 = vunpack.c.h.b16 %v318
    %v1175 = vunpack.c.l.b16 %v319
    %v1176 = vunpack.c.h.b16 %v319
    %v1177 = vunpack.c.l.b16 %v320
    %v1178 = vunpack.c.h.b16 %v320
    %v1179 = vunpack.c.l.b16 %v321
    %v1180 = vunpack.c.h.b16 %v321
    %v1181 = vunpack.c.l.b16 %v322
    %v1182 = vunpack.c.h.b16 %v322
    %v1183 = vpack.c.b16 %v673, %v671
    %v1184 = vpack.c.b16 %v674, %v672
    %v1185 = vpack.c.b16 %v677, %v675
    %v1186 = vpack.c.b16 %v678, %v676
    %v1187 = vpack.c.b16 %v681, %v679
    %v1188 = vpack.c.b16 %v682, %v680
    %v1189 = vpack.c.b16 %v685, %v683
    %v1190 = vpack.c.b16 %v686, %v684
    %v1191 = vpack.c.b16 %v689, %v687
    %v1192 = vpack.c.b16 %v690, %v688
    %v1193 = vpack.c.b16 %v693, %v691
    %v1194 = vpack.c.b16 %v694, %v692
    %v1195 = vpack.c.b16 %v697, %v695
    %v1196 = vpack.c.b16 %v698, %v696
    %v1197 = vpack.c.b16 %v701, %v699
    %v1198 = vpack.c.b16 %v702, %v700
    %v1199 = vpack.c.b16 %v705, %v703
    %v1200 = vpack.c.b16 %v706, %v704
    %v1201 = vpack.c.b16 %v709, %v707
    %v1202 = vpack.c.b16 %v710, %v708
    %v1203 = vpack.c.b16 %v713, %v711
    %v1204 = vpack.c.b16 %v714, %v712
    %v1205 = vpack.c.b16 %v717, %v715
    %v1206 = vpack.c.b16 %v718, %v716
    %v1207 = vpack.c.b16 %v721, %v719
    %v1208 = vpack.c.b16 %v722, %v720
    %v1209 = vpack.c.b16 %v725, %v723
    %v1210 = vpack.c.b16 %v726, %v724
    %v1211 = vpack.c.b16 %v729, %v727
    %v1212 = vpack.c.b16 %v730, %v728
    %v1213 = vpack.c.b16 %v733, %v731
    %v1214 = vpack.c.b16 %v734, %v732
    %v1215 = vpack.c.b16 %v737, %v735
    %v1216 = vpack.c.b16 %v738, %v736
    %v1217 = vpack.c.b16 %v741, %v739
    %v1218 = vpack.c.b16 %v742, %v740
    %v1219 = vpack.c.b16 %v745, %v743
    %v1220 = vpack.c.b16 %v746, %v744
    %v1221 = vpack.c.b16 %v749, %v747
    %v1222 = vpack.c.b16 %v750, %v748
    %v1223 = vpack.c.b16 %v753, %v751
    %v1224 = vpack.c.b16 %v754, %v752
    %v1225 = vpack.c.b16 %v757, %v755
    %v1226 = vpack.c.b16 %v758, %v756
    %v1227 = vpack.c.b16 %v761, %v759
    %v1228 = vpack.c.b16 %v762, %v760
    %v1229 = vpack.c.b16 %v765, %v763
    %v1230 = vpack.c.b16 %v766, %v764
    %v1231 = vpack.c.b16 %v769, %v767
    %v1232 = vpack.c.b16 %v770, %v768
    %v1233 = vpack.c.b16 %v773, %v771
    %v1234 = vpack.c.b16 %v774, %v772
    %v1235 = vpack.c.b16 %v777, %v775
    %v1236 = vpack.c.b16 %v778, %v776
    %v1237 = vpack.c.b16 %v781, %v779
    %v1238 = vpack.c.b16 %v782, %v780
    %v1239 = vpack.c.b16 %v785, %v783
    %v1240 = vpack.c.b16 %v786, %v784
    %v1241 = vpack.c.b16 %v789, %v787
    %v1242 = vpack.c.b16 %v790, %v788
    %v1243 = vpack.c.b16 %v793, %v791
    %v1244 = vpack.c.b16 %v794, %v792
    %v1245 = vpack.c.b16 %v797, %v795
    %v1246 = vpack.c.b16 %v798, %v796
    %v1247 = vpack.c.b16 %v801, %v799
    %v1248 = vpack.c.b16 %v802, %v800
    %v1249 = vpack.c.b16 %v805, %v803
    %v1250 = vpack.c.b16 %v806, %v804
    %v1251 = vpack.c.b16 %v809, %v807
    %v1252 = vpack.c.b16 %v810, %v808
    %v1253 = vpack.c.b16 %v813, %v811
    %v1254 = vpack.c.b16 %v814, %v812
    %v1255 = vpack.c.b16 %v817, %v815
    %v1256 = vpack.c.b16 %v818, %v816
    %v1257 = vpack.c.b16 %v821, %v819
    %v1258 = vpack.c.b16 %v822, %v820
    %v1259 = vpack.c.b16 %v825, %v823
    %v1260 = vpack.c.b16 %v826, %v824
    %v1261 = vpack.c.b16 %v829, %v827
    %v1262 = vpack.c.b16 %v830, %v828
    %v1263 = vpack.c.b16 %v833, %v831
    %v1264 = vpack.c.b16 %v834, %v832
    %v1265 = vpack.c.b16 %v837, %v835
    %v1266 = vpack.c.b16 %v838, %v836
    %v1267 = vpack.c.b16 %v841, %v839
    %v1268 = vpack.c.b16 %v842, %v840
    %v1269 = vpack.c.b16 %v845, %v843
    %v1270 = vpack.c.b16 %v846, %v844
    %v1271 = vpack.c.b16 %v849, %v847
    %v1272 = vpack.c.b16 %v850, %v848
    %v1273 = vpack.c.b16 %v853, %v851
    %v1274 = vpack.c.b16 %v854, %v852
    %v1275 = vpack.c.b16 %v857, %v855
    %v1276 = vpack.c.b16 %v858, %v856
    %v1277 = vpack.c.b16 %v861, %v859
    %v1278 = vpack.c.b16 %v862, %v860
    %v1279 = vpack.c.b16 %v865, %v863
    %v1280 = vpack.c.b16 %v866, %v864
    %v1281 = vpack.c.b16 %v869, %v867
    %v1282 = vpack.c.b16 %v870, %v868
    %v1283 = vpack.c.b16 %v873, %v871
    %v1284 = vpack.c.b16 %v874, %v872
    %v1285 = vpack.c.b16 %v877, %v875
    %v1286 = vpack.c.b16 %v878, %v876
    %v1287 = vpack.c.b16 %v881, %v879
    %v1288 = vpack.c.b16 %v882, %v880
    %v1289 = vpack.c.b16 %v885, %v883
    %v1290 = vpack.c.b16 %v886, %v884
    %v1291 = vpack.c.b16 %v889, %v887
    %v1292 = vpack.c.b16 %v890, %v888
    %v1293 = vpack.c.b16 %v893, %v891
    %v1294 = vpack.c.b16 %v894, %v892
    %v1295 = vpack.c.b16 %v897, %v895
    %v1296 = vpack.c.b16 %v898, %v896
    %v1297 = vpack.c.b16 %v901, %v899
    %v1298 = vpack.c.b16 %v902, %v900
    %v1299 = vpack.c.b16 %v905, %v903
    %v1300 = vpack.c.b16 %v906, %v904
    %v1301 = vpack.c.b16 %v909, %v907
    %v1302 = vpack.c.b16 %v910, %v908
    %v1303 = vpack.c.b16 %v913, %v911
    %v1304 = vpack.c.b16 %v914, %v912
    %v1305 = vpack.c.b16 %v917, %v915
    %v1306 = vpack.c.b16 %v918, %v916
    %v1307 = vpack.c.b16 %v921, %v919
    %v1308 = vpack.c.b16 %v922, %v920
    %v1309 = vpack.c.b16 %v925, %v923
    %v1310 = vpack.c.b16 %v926, %v924
    %v1311 = vpack.c.b16 %v929, %v927
    %v1312 = vpack.c.b16 %v930, %v928
    %v1313 = vpack.c.b16 %v933, %v931
    %v1314 = vpack.c.b16 %v934, %v932
    %v1315 = vpack.c.b16 %v937, %v935
    %v1316 = vpack.c.b16 %v938, %v936
    %v1317 = vpack.c.b16 %v941, %v939
    %v1318 = vpack.c.b16 %v942, %v940
    %v1319 = vpack.c.b16 %v945, %v943
    %v1320 = vpack.c.b16 %v946, %v944
    %v1321 = vpack.c.b16 %v949, %v947
    %v1322 = vpack.c.b16 %v950, %v948
    %v1323 = vpack.c.b16 %v953, %v951
    %v1324 = vpack.c.b16 %v954, %v952
    %v1325 = vpack.c.b16 %v957, %v955
    %v1326 = vpack.c.b16 %v958, %v956
    %v1327 = vpack.c.b16 %v961, %v959
    %v1328 = vpack.c.b16 %v962, %v960
    %v1329 = vpack.c.b16 %v965, %v963
    %v1330 = vpack.c.b16 %v966, %v964
    %v1331 = vpack.c.b16 %v969, %v967
    %v1332 = vpack.c.b16 %v970, %v968
    %v1333 = vpack.c.b16 %v973, %v971
    %v1334 = vpack.c.b16 %v974, %v972
    %v1335 = vpack.c.b16 %v977, %v975
    %v1336 = vpack.c.b16 %v978, %v976
    %v1337 = vpack.c.b16 %v981, %v979
    %v1338 = vpack.c.b16 %v982, %v980
    %v1339 = vpack.c.b16 %v985, %v983
    %v1340 = vpack.c.b16 %v986, %v984
    %v1341 = vpack.c.b16 %v989, %v987
    %v1342 = vpack.c.b16 %v990, %v988
    %v1343 = vpack.c.b16 %v993, %v991
    %v1344 = vpack.c.b16 %v994, %v992
    %v1345 = vpack.c.b16 %v997, %v995
    %v1346 = vpack.c.b16 %v998, %v996
    %v1347 = vpack.c.b16 %v1001, %v999
    %v1348 = vpack.c.b16 %v1002, %v1000
    %v1349 = vpack.c.b16 %v1005, %v1003
    %v1350 = vpack.c.b16 %v1006, %v1004
    %v1351 = vpack.c.b16 %v1009, %v1007
    %v1352 = vpack.c.b16 %v1010, %v1008
    %v1353 = vpack.c.b16 %v1013, %v1011
    %v1354 = vpack.c.b16 %v1014, %v1012
    %v1355 = vpack.c.b16 %v1017, %v1015
    %v1356 = vpack.c.b16 %v1018, %v1016
    %v1357 = vpack.c.b16 %v1021, %v1019
    %v1358 = vpack.c.b16 %v1022, %v1020
    %v1359 = vpack.c.b16 %v1025, %v1023
    %v1360 = vpack.c.b16 %v1026, %v1024
    %v1361 = vpack.c.b16 %v1029, %v1027
    %v1362 = vpack.c.b16 %v1030, %v1028
    %v1363 = vpack.c.b16 %v1033, %v1031
    %v1364 = vpack.c.b16 %v1034, %v1032
    %v1365 = vpack.c.b16 %v1037, %v1035
    %v1366 = vpack.c.b16 %v1038, %v1036
    %v1367 = vpack.c.b16 %v1041, %v1039
    %v1368 = vpack.c.b16 %v1042, %v1040
    %v1369 = vpack.c.b16 %v1045, %v1043
    %v1370 = vpack.c.b16 %v1046, %v1044
    %v1371 = vpack.c.b16 %v1049, %v1047
    %v1372 = vpack.c.b16 %v1050, %v1048
    %v1373 = vpack.c.b16 %v1053, %v1051
    %v1374 = vpack.c.b16 %v1054, %v1052
    %v1375 = vpack.c.b16 %v1057, %v1055
    %v1376 = vpack.c.b16 %v1058, %v1056
    %v1377 = vpack.c.b16 %v1061, %v1059
    %v1378 = vpack.c.b16 %v1062, %v1060
    %v1379 = vpack.c.b16 %v1065, %v1063
    %v1380 = vpack.c.b16 %v1066, %v1064
    %v1381 = vpack.c.b16 %v1069, %v1067
    %v1382 = vpack.c.b16 %v1070, %v1068
    %v1383 = vpack.c.b16 %v1073, %v1071
    %v1384 = vpack.c.b16 %v1074, %v1072
    %v1385 = vpack.c.b16 %v1077, %v1075
    %v1386 = vpack.c.b16 %v1078, %v1076
    %v1387 = vpack.c.b16 %v1081, %v1079
    %v1388 = vpack.c.b16 %v1082, %v1080
    %v1389 = vpack.c.b16 %v1085, %v1083
    %v1390 = vpack.c.b16 %v1086, %v1084
    %v1391 = vpack.c.b16 %v1089, %v1087
    %v1392 = vpack.c.b16 %v1090, %v1088
    %v1393 = vpack.c.b16 %v1093, %v1091
    %v1394 = vpack.c.b16 %v1094, %v1092
    %v1395 = vpack.c.b16 %v1097, %v1095
    %v1396 = vpack.c.b16 %v1098, %v1096
    %v1397 = vpack.c.b16 %v1101, %v1099
    %v1398 = vpack.c.b16 %v1102, %v1100
    %v1399 = vpack.c.b16 %v1105, %v1103
    %v1400 = vpack.c.b16 %v1106, %v1104
    %v1401 = vpack.c.b16 %v1109, %v1107
    %v1402 = vpack.c.b16 %v1110, %v1108
    %v1403 = vpack.c.b16 %v1113, %v1111
    %v1404 = vpack.c.b16 %v1114, %v1112
    %v1405 = vpack.c.b16 %v1117, %v1115
    %v1406 = vpack.c.b16 %v1118, %v1116
    %v1407 = vpack.c.b16 %v1121, %v1119
    %v1408 = vpack.c.b16 %v1122, %v1120
    %v1409 = vpack.c.b16 %v1125, %v1123
    %v1410 = vpack.c.b16 %v1126, %v1124
    %v1411 = vpack.c.b16 %v1129, %v1127
    %v1412 = vpack.c.b16 %v1130, %v1128
    %v1413 = vpack.c.b16 %v1133, %v1131
    %v1414 = vpack.c.b16 %v1134, %v1132
    %v1415 = vpack.c.b16 %v1137, %v1135
    %v1416 = vpack.c.b16 %v1138, %v1136
    %v1417 = vpack.c.b16 %v1141, %v1139
    %v1418 = vpack.c.b16 %v1142, %v1140
    %v1419 = vpack.c.b16 %v1145, %v1143
    %v1420 = vpack.c.b16 %v1146, %v1144
    %v1421 = vpack.c.b16 %v1149, %v1147
    %v1422 = vpack.c.b16 %v1150, %v1148
    %v1423 = vpack.c.b16 %v1153, %v1151
    %v1424 = vpack.c.b16 %v1154, %v1152
    %v1425 = vpack.c.b16 %v1157, %v1155
    %v1426 = vpack.c.b16 %v1158, %v1156
    %v1427 = vpack.c.b16 %v1161, %v1159
    %v1428 = vpack.c.b16 %v1162, %v1160
    %v1429 = vpack.c.b16 %v1165, %v1163
    %v1430 = vpack.c.b16 %v1166, %v1164
    %v1431 = vpack.c.b16 %v1169, %v1167
    %v1432 = vpack.c.b16 %v1170, %v1168
    %v1433 = vpack.c.b16 %v1173, %v1171
    %v1434 = vpack.c.b16 %v1174, %v1172
    %v1435 = vpack.c.b16 %v1177, %v1175
    %v1436 = vpack.c.b16 %v1178, %v1176
    %v1437 = vpack.c.b16 %v1181, %v1179
    %v1438 = vpack.c.b16 %v1182, %v1180
    %1695 = vmatprep.subr.bf16.mxu0 %v1184
    %1696 = vmatpush1.bf16.msra.mxu0 %v1183
    %1697 = vmatprep.subr.bf16.mxu0 %v1186
    %1698 = vmatpush1.bf16.msra.mxu0 %v1185
    %1699 = vmatprep.subr.bf16.mxu0 %v1188
    %1700 = vmatpush1.bf16.msra.mxu0 %v1187
    %1701 = vmatprep.subr.bf16.mxu0 %v1190
    %1702 = vmatpush1.bf16.msra.mxu0 %v1189
    %1703 = vmatprep.subr.bf16.mxu0 %v1192
    %1704 = vmatpush1.bf16.msra.mxu0 %v1191
    %1705 = vmatprep.subr.bf16.mxu0 %v1194
    %1706 = vmatpush1.bf16.msra.mxu0 %v1193
    %1707 = vmatprep.subr.bf16.mxu0 %v1196
    %1708 = vmatpush1.bf16.msra.mxu0 %v1195
    %1709 = vmatprep.subr.bf16.mxu0 %v1198
    %1710 = vmatpush1.bf16.msra.mxu0 %v1197
    %1711 = vmatprep.subr.bf16.mxu0 %v1200
    %1712 = vmatpush1.bf16.msra.mxu0 %v1199
    %1713 = vmatprep.subr.bf16.mxu0 %v1202
    %1714 = vmatpush1.bf16.msra.mxu0 %v1201
    %1715 = vmatprep.subr.bf16.mxu0 %v1204
    %1716 = vmatpush1.bf16.msra.mxu0 %v1203
    %1717 = vmatprep.subr.bf16.mxu0 %v1206
    %1718 = vmatpush1.bf16.msra.mxu0 %v1205
    %1719 = vmatprep.subr.bf16.mxu0 %v1208
    %1720 = vmatpush1.bf16.msra.mxu0 %v1207
    %1721 = vmatprep.subr.bf16.mxu0 %v1210
    %1722 = vmatpush1.bf16.msra.mxu0 %v1209
    %1723 = vmatprep.subr.bf16.mxu0 %v1212
    %1724 = vmatpush1.bf16.msra.mxu0 %v1211
    %1725 = vmatprep.subr.bf16.mxu0 %v1214
    %1726 = vmatpush1.bf16.msra.mxu0 %v1213
    %1727 = vmatprep.mubr.bf16.mxu0 %v384
    %1728 = vmatmul.mubr.bf16.gmra.mrb[0].mxu0 %v383
    %v1729 = vpop.f32.mrb[0].mxu0
    %v1730 = vadd.f32 %v328, %v1729
    %v1731 = vpop.f32.mrb[0].mxu0
    %v1732 = vadd.f32 %v332, %v1731
    %v1733 = vpop.f32.mrb[0].mxu0
    %v1734 = vadd.f32 %v328, %v1733
    %v1735 = vpop.f32.mrb[0].mxu0
    %v1736 = vadd.f32 %v332, %v1735
    %1737 = vdwg.mxu0
    %1738 = vmatprep.subr.bf16.mxu0 %v1216
    %1739 = vmatpush1.bf16.msra.mxu0 %v1215
    %1740 = vmatprep.subr.bf16.mxu0 %v1218
    %1741 = vmatpush1.bf16.msra.mxu0 %v1217
    %1742 = vmatprep.subr.bf16.mxu0 %v1220
    %1743 = vmatpush1.bf16.msra.mxu0 %v1219
    %1744 = vmatprep.subr.bf16.mxu0 %v1222
    %1745 = vmatpush1.bf16.msra.mxu0 %v1221
    %1746 = vmatprep.subr.bf16.mxu0 %v1224
    %1747 = vmatpush1.bf16.msra.mxu0 %v1223
    %1748 = vmatprep.subr.bf16.mxu0 %v1226
    %1749 = vmatpush1.bf16.msra.mxu0 %v1225
    %1750 = vmatprep.subr.bf16.mxu0 %v1228
    %1751 = vmatpush1.bf16.msra.mxu0 %v1227
    %1752 = vmatprep.subr.bf16.mxu0 %v1230
    %1753 = vmatpush1.bf16.msra.mxu0 %v1229
    %1754 = vmatprep.subr.bf16.mxu0 %v1232
    %1755 = vmatpush1.bf16.msra.mxu0 %v1231
    %1756 = vmatprep.subr.bf16.mxu0 %v1234
    %1757 = vmatpush1.bf16.msra.mxu0 %v1233
    %1758 = vmatprep.subr.bf16.mxu0 %v1236
    %1759 = vmatpush1.bf16.msra.mxu0 %v1235
    %1760 = vmatprep.subr.bf16.mxu0 %v1238
    %1761 = vmatpush1.bf16.msra.mxu0 %v1237
    %1762 = vmatprep.subr.bf16.mxu0 %v1240
    %1763 = vmatpush1.bf16.msra.mxu0 %v1239
    %1764 = vmatprep.subr.bf16.mxu0 %v1242
    %1765 = vmatpush1.bf16.msra.mxu0 %v1241
    %1766 = vmatprep.subr.bf16.mxu0 %v1244
    %1767 = vmatpush1.bf16.msra.mxu0 %v1243
    %1768 = vmatprep.subr.bf16.mxu0 %v1246
    %1769 = vmatpush1.bf16.msra.mxu0 %v1245
    %1770 = vmatprep.mubr.bf16.mxu0 %v386
    %1771 = vmatmul.mubr.bf16.gmra.mrb[0].mxu0 %v385
    %v1772 = vpop.f32.mrb[0].mxu0
    %v1773 = vadd.f32 %v1730, %v1772
    %v1774 = vpop.f32.mrb[0].mxu0
    %v1775 = vadd.f32 %v1732, %v1774
    %v1776 = vpop.f32.mrb[0].mxu0
    %v1777 = vadd.f32 %v1734, %v1776
    %v1778 = vpop.f32.mrb[0].mxu0
    %v1779 = vadd.f32 %v1736, %v1778
    %1780 = vdwg.mxu0
    %1781 = vmatprep.subr.bf16.mxu0 %v1248
    %1782 = vmatpush1.bf16.msra.mxu0 %v1247
    %1783 = vmatprep.subr.bf16.mxu0 %v1250
    %1784 = vmatpush1.bf16.msra.mxu0 %v1249
    %1785 = vmatprep.subr.bf16.mxu0 %v1252
    %1786 = vmatpush1.bf16.msra.mxu0 %v1251
    %1787 = vmatprep.subr.bf16.mxu0 %v1254
    %1788 = vmatpush1.bf16.msra.mxu0 %v1253
    %1789 = vmatprep.subr.bf16.mxu0 %v1256
    %1790 = vmatpush1.bf16.msra.mxu0 %v1255
    %1791 = vmatprep.subr.bf16.mxu0 %v1258
    %1792 = vmatpush1.bf16.msra.mxu0 %v1257
    %1793 = vmatprep.subr.bf16.mxu0 %v1260
    %1794 = vmatpush1.bf16.msra.mxu0 %v1259
    %1795 = vmatprep.subr.bf16.mxu0 %v1262
    %1796 = vmatpush1.bf16.msra.mxu0 %v1261
    %1797 = vmatprep.subr.bf16.mxu0 %v1264
    %1798 = vmatpush1.bf16.msra.mxu0 %v1263
    %1799 = vmatprep.subr.bf16.mxu0 %v1266
    %1800 = vmatpush1.bf16.msra.mxu0 %v1265
    %1801 = vmatprep.subr.bf16.mxu0 %v1268
    %1802 = vmatpush1.bf16.msra.mxu0 %v1267
    %1803 = vmatprep.subr.bf16.mxu0 %v1270
    %1804 = vmatpush1.bf16.msra.mxu0 %v1269
    %1805 = vmatprep.subr.bf16.mxu0 %v1272
    %1806 = vmatpush1.bf16.msra.mxu0 %v1271
    %1807 = vmatprep.subr.bf16.mxu0 %v1274
    %1808 = vmatpush1.bf16.msra.mxu0 %v1273
    %1809 = vmatprep.subr.bf16.mxu0 %v1276
    %1810 = vmatpush1.bf16.msra.mxu0 %v1275
    %1811 = vmatprep.subr.bf16.mxu0 %v1278
    %1812 = vmatpush1.bf16.msra.mxu0 %v1277
    %1813 = vmatprep.mubr.bf16.mxu0 %v388
    %1814 = vmatmul.mubr.bf16.gmra.mrb[0].mxu0 %v387
    %v1815 = vpop.f32.mrb[0].mxu0
    %v1816 = vadd.f32 %v1773, %v1815
    %v1817 = vpop.f32.mrb[0].mxu0
    %v1818 = vadd.f32 %v1775, %v1817
    %v1819 = vpop.f32.mrb[0].mxu0
    %v1820 = vadd.f32 %v1777, %v1819
    %v1821 = vpop.f32.mrb[0].mxu0
    %v1822 = vadd.f32 %v1779, %v1821
    %1823 = vdwg.mxu0
    %1824 = vmatprep.subr.bf16.mxu0 %v1280
    %1825 = vmatpush1.bf16.msra.mxu0 %v1279
    %1826 = vmatprep.subr.bf16.mxu0 %v1282
    %1827 = vmatpush1.bf16.msra.mxu0 %v1281
    %1828 = vmatprep.subr.bf16.mxu0 %v1284
    %1829 = vmatpush1.bf16.msra.mxu0 %v1283
    %1830 = vmatprep.subr.bf16.mxu0 %v1286
    %1831 = vmatpush1.bf16.msra.mxu0 %v1285
    %1832 = vmatprep.subr.bf16.mxu0 %v1288
    %1833 = vmatpush1.bf16.msra.mxu0 %v1287
    %1834 = vmatprep.subr.bf16.mxu0 %v1290
    %1835 = vmatpush1.bf16.msra.mxu0 %v1289
    %1836 = vmatprep.subr.bf16.mxu0 %v1292
    %1837 = vmatpush1.bf16.msra.mxu0 %v1291
    %1838 = vmatprep.subr.bf16.mxu0 %v1294
    %1839 = vmatpush1.bf16.msra.mxu0 %v1293
    %1840 = vmatprep.subr.bf16.mxu0 %v1296
    %1841 = vmatpush1.bf16.msra.mxu0 %v1295
    %1842 = vmatprep.subr.bf16.mxu0 %v1298
    %1843 = vmatpush1.bf16.msra.mxu0 %v1297
    %1844 = vmatprep.subr.bf16.mxu0 %v1300
    %1845 = vmatpush1.bf16.msra.mxu0 %v1299
    %1846 = vmatprep.subr.bf16.mxu0 %v1302
    %1847 = vmatpush1.bf16.msra.mxu0 %v1301
    %1848 = vmatprep.subr.bf16.mxu0 %v1304
    %1849 = vmatpush1.bf16.msra.mxu0 %v1303
    %1850 = vmatprep.subr.bf16.mxu0 %v1306
    %1851 = vmatpush1.bf16.msra.mxu0 %v1305
    %1852 = vmatprep.subr.bf16.mxu0 %v1308
    %1853 = vmatpush1.bf16.msra.mxu0 %v1307
    %1854 = vmatprep.subr.bf16.mxu0 %v1310
    %1855 = vmatpush1.bf16.msra.mxu0 %v1309
    %1856 = vmatprep.mubr.bf16.mxu0 %v390
    %1857 = vmatmul.mubr.bf16.gmra.mrb[0].mxu0 %v389
    %v1858 = vpop.f32.mrb[0].mxu0
    %v1859 = vadd.f32 %v1816, %v1858
    %v1860 = vpop.f32.mrb[0].mxu0
    %v1861 = vadd.f32 %v1818, %v1860
    %v1862 = vpop.f32.mrb[0].mxu0
    %v1863 = vadd.f32 %v1820, %v1862
    %v1864 = vpop.f32.mrb[0].mxu0
    %v1865 = vadd.f32 %v1822, %v1864
    %1866 = vdwg.mxu0
    %1867 = vmatprep.subr.bf16.mxu0 %v1312
    %1868 = vmatpush1.bf16.msra.mxu0 %v1311
    %1869 = vmatprep.subr.bf16.mxu0 %v1314
    %1870 = vmatpush1.bf16.msra.mxu0 %v1313
    %1871 = vmatprep.subr.bf16.mxu0 %v1316
    %1872 = vmatpush1.bf16.msra.mxu0 %v1315
    %1873 = vmatprep.subr.bf16.mxu0 %v1318
    %1874 = vmatpush1.bf16.msra.mxu0 %v1317
    %1875 = vmatprep.subr.bf16.mxu0 %v1320
    %1876 = vmatpush1.bf16.msra.mxu0 %v1319
    %1877 = vmatprep.subr.bf16.mxu0 %v1322
    %1878 = vmatpush1.bf16.msra.mxu0 %v1321
    %1879 = vmatprep.subr.bf16.mxu0 %v1324
    %1880 = vmatpush1.bf16.msra.mxu0 %v1323
    %1881 = vmatprep.subr.bf16.mxu0 %v1326
    %1882 = vmatpush1.bf16.msra.mxu0 %v1325
    %1883 = vmatprep.subr.bf16.mxu0 %v1328
    %1884 = vmatpush1.bf16.msra.mxu0 %v1327
    %1885 = vmatprep.subr.bf16.mxu0 %v1330
    %1886 = vmatpush1.bf16.msra.mxu0 %v1329
    %1887 = vmatprep.subr.bf16.mxu0 %v1332
    %1888 = vmatpush1.bf16.msra.mxu0 %v1331
    %1889 = vmatprep.subr.bf16.mxu0 %v1334
    %1890 = vmatpush1.bf16.msra.mxu0 %v1333
    %1891 = vmatprep.subr.bf16.mxu0 %v1336
    %1892 = vmatpush1.bf16.msra.mxu0 %v1335
    %1893 = vmatprep.subr.bf16.mxu0 %v1338
    %1894 = vmatpush1.bf16.msra.mxu0 %v1337
    %1895 = vmatprep.subr.bf16.mxu0 %v1340
    %1896 = vmatpush1.bf16.msra.mxu0 %v1339
    %1897 = vmatprep.subr.bf16.mxu0 %v1342
    %1898 = vmatpush1.bf16.msra.mxu0 %v1341
    %1899 = vmatprep.mubr.bf16.mxu0 %v392
    %1900 = vmatmul.mubr.bf16.gmra.mrb[0].mxu0 %v391
    %v1901 = vpop.f32.mrb[0].mxu0
    %v1902 = vadd.f32 %v1859, %v1901
    %v1903 = vpop.f32.mrb[0].mxu0
    %v1904 = vadd.f32 %v1861, %v1903
    %v1905 = vpop.f32.mrb[0].mxu0
    %v1906 = vadd.f32 %v1863, %v1905
    %v1907 = vpop.f32.mrb[0].mxu0
    %v1908 = vadd.f32 %v1865, %v1907
    %1909 = vdwg.mxu0
    %1910 = vmatprep.subr.bf16.mxu0 %v1344
    %1911 = vmatpush1.bf16.msra.mxu0 %v1343
    %1912 = vmatprep.subr.bf16.mxu0 %v1346
    %1913 = vmatpush1.bf16.msra.mxu0 %v1345
    %1914 = vmatprep.subr.bf16.mxu0 %v1348
    %1915 = vmatpush1.bf16.msra.mxu0 %v1347
    %1916 = vmatprep.subr.bf16.mxu0 %v1350
    %1917 = vmatpush1.bf16.msra.mxu0 %v1349
    %1918 = vmatprep.subr.bf16.mxu0 %v1352
    %1919 = vmatpush1.bf16.msra.mxu0 %v1351
    %1920 = vmatprep.subr.bf16.mxu0 %v1354
    %1921 = vmatpush1.bf16.msra.mxu0 %v1353
    %1922 = vmatprep.subr.bf16.mxu0 %v1356
    %1923 = vmatpush1.bf16.msra.mxu0 %v1355
    %1924 = vmatprep.subr.bf16.mxu0 %v1358
    %1925 = vmatpush1.bf16.msra.mxu0 %v1357
    %1926 = vmatprep.subr.bf16.mxu0 %v1360
    %1927 = vmatpush1.bf16.msra.mxu0 %v1359
    %1928 = vmatprep.subr.bf16.mxu0 %v1362
    %1929 = vmatpush1.bf16.msra.mxu0 %v1361
    %1930 = vmatprep.subr.bf16.mxu0 %v1364
    %1931 = vmatpush1.bf16.msra.mxu0 %v1363
    %1932 = vmatprep.subr.bf16.mxu0 %v1366
    %1933 = vmatpush1.bf16.msra.mxu0 %v1365
    %1934 = vmatprep.subr.bf16.mxu0 %v1368
    %1935 = vmatpush1.bf16.msra.mxu0 %v1367
    %1936 = vmatprep.subr.bf16.mxu0 %v1370
    %1937 = vmatpush1.bf16.msra.mxu0 %v1369
    %1938 = vmatprep.subr.bf16.mxu0 %v1372
    %1939 = vmatpush1.bf16.msra.mxu0 %v1371
    %1940 = vmatprep.subr.bf16.mxu0 %v1374
    %1941 = vmatpush1.bf16.msra.mxu0 %v1373
    %1942 = vmatprep.mubr.bf16.mxu0 %v394
    %1943 = vmatmul.mubr.bf16.gmra.mrb[0].mxu0 %v393
    %v1944 = vpop.f32.mrb[0].mxu0
    %v1945 = vadd.f32 %v1902, %v1944
    %v1946 = vpop.f32.mrb[0].mxu0
    %v1947 = vadd.f32 %v1904, %v1946
    %v1948 = vpop.f32.mrb[0].mxu0
    %v1949 = vadd.f32 %v1906, %v1948
    %v1950 = vpop.f32.mrb[0].mxu0
    %v1951 = vadd.f32 %v1908, %v1950
    %1952 = vdwg.mxu0
    %1953 = vmatprep.subr.bf16.mxu0 %v1376
    %1954 = vmatpush1.bf16.msra.mxu0 %v1375
    %1955 = vmatprep.subr.bf16.mxu0 %v1378
    %1956 = vmatpush1.bf16.msra.mxu0 %v1377
    %1957 = vmatprep.subr.bf16.mxu0 %v1380
    %1958 = vmatpush1.bf16.msra.mxu0 %v1379
    %1959 = vmatprep.subr.bf16.mxu0 %v1382
    %1960 = vmatpush1.bf16.msra.mxu0 %v1381
    %1961 = vmatprep.subr.bf16.mxu0 %v1384
    %1962 = vmatpush1.bf16.msra.mxu0 %v1383
    %1963 = vmatprep.subr.bf16.mxu0 %v1386
    %1964 = vmatpush1.bf16.msra.mxu0 %v1385
    %1965 = vmatprep.subr.bf16.mxu0 %v1388
    %1966 = vmatpush1.bf16.msra.mxu0 %v1387
    %1967 = vmatprep.subr.bf16.mxu0 %v1390
    %1968 = vmatpush1.bf16.msra.mxu0 %v1389
    %1969 = vmatprep.subr.bf16.mxu0 %v1392
    %1970 = vmatpush1.bf16.msra.mxu0 %v1391
    %1971 = vmatprep.subr.bf16.mxu0 %v1394
    %1972 = vmatpush1.bf16.msra.mxu0 %v1393
    %1973 = vmatprep.subr.bf16.mxu0 %v1396
    %1974 = vmatpush1.bf16.msra.mxu0 %v1395
    %1975 = vmatprep.subr.bf16.mxu0 %v1398
    %1976 = vmatpush1.bf16.msra.mxu0 %v1397
    %1977 = vmatprep.subr.bf16.mxu0 %v1400
    %1978 = vmatpush1.bf16.msra.mxu0 %v1399
    %1979 = vmatprep.subr.bf16.mxu0 %v1402
    %1980 = vmatpush1.bf16.msra.mxu0 %v1401
    %1981 = vmatprep.subr.bf16.mxu0 %v1404
    %1982 = vmatpush1.bf16.msra.mxu0 %v1403
    %1983 = vmatprep.subr.bf16.mxu0 %v1406
    %1984 = vmatpush1.bf16.msra.mxu0 %v1405
    %1985 = vmatprep.mubr.bf16.mxu0 %v396
    %1986 = vmatmul.mubr.bf16.gmra.mrb[0].mxu0 %v395
    %v1987 = vpop.f32.mrb[0].mxu0
    %v1988 = vadd.f32 %v1945, %v1987
    %v1989 = vpop.f32.mrb[0].mxu0
    %v1990 = vadd.f32 %v1947, %v1989
    %v1991 = vpop.f32.mrb[0].mxu0
    %v1992 = vadd.f32 %v1949, %v1991
    %v1993 = vpop.f32.mrb[0].mxu0
    %v1994 = vadd.f32 %v1951, %v1993
    %1995 = vdwg.mxu0
    %1996 = vmatprep.subr.bf16.mxu0 %v1408
    %1997 = vmatpush1.bf16.msra.mxu0 %v1407
    %1998 = vmatprep.subr.bf16.mxu0 %v1410
    %1999 = vmatpush1.bf16.msra.mxu0 %v1409
    %2000 = vmatprep.subr.bf16.mxu0 %v1412
    %2001 = vmatpush1.bf16.msra.mxu0 %v1411
    %2002 = vmatprep.subr.bf16.mxu0 %v1414
    %2003 = vmatpush1.bf16.msra.mxu0 %v1413
    %2004 = vmatprep.subr.bf16.mxu0 %v1416
    %2005 = vmatpush1.bf16.msra.mxu0 %v1415
    %2006 = vmatprep.subr.bf16.mxu0 %v1418
    %2007 = vmatpush1.bf16.msra.mxu0 %v1417
    %2008 = vmatprep.subr.bf16.mxu0 %v1420
    %2009 = vmatpush1.bf16.msra.mxu0 %v1419
    %2010 = vmatprep.subr.bf16.mxu0 %v1422
    %2011 = vmatpush1.bf16.msra.mxu0 %v1421
    %2012 = vmatprep.subr.bf16.mxu0 %v1424
    %2013 = vmatpush1.bf16.msra.mxu0 %v1423
    %2014 = vmatprep.subr.bf16.mxu0 %v1426
    %2015 = vmatpush1.bf16.msra.mxu0 %v1425
    %2016 = vmatprep.subr.bf16.mxu0 %v1428
    %2017 = vmatpush1.bf16.msra.mxu0 %v1427
    %2018 = vmatprep.subr.bf16.mxu0 %v1430
    %2019 = vmatpush1.bf16.msra.mxu0 %v1429
    %2020 = vmatprep.subr.bf16.mxu0 %v1432
    %2021 = vmatpush1.bf16.msra.mxu0 %v1431
    %2022 = vmatprep.subr.bf16.mxu0 %v1434
    %2023 = vmatpush1.bf16.msra.mxu0 %v1433
    %2024 = vmatprep.subr.bf16.mxu0 %v1436
    %2025 = vmatpush1.bf16.msra.mxu0 %v1435
    %2026 = vmatprep.subr.bf16.mxu0 %v1438
    %2027 = vmatpush1.bf16.msra.mxu0 %v1437
    %2028 = vmatprep.mubr.bf16.mxu0 %v398
    %2029 = vmatmul.mubr.bf16.gmra.mrb[0].mxu0 %v397
    %v2030 = vpop.f32.mrb[0].mxu0
    %v2031 = vadd.f32 %v1988, %v2030
    %v2032 = vpop.f32.mrb[0].mxu0
    %v2033 = vadd.f32 %v1990, %v2032
    %v2034 = vpop.f32.mrb[0].mxu0
    %v2035 = vadd.f32 %v1992, %v2034
    %v2036 = vpop.f32.mrb[0].mxu0
    %v2037 = vadd.f32 %v1994, %v2036
    %2038 = vdwg.mxu0
    %v2039 = vmax.f32 %v2031, 0.0
    %v2040 = vmax.f32 %v2033, 0.0
    %v2041 = vmax.f32 %v2035, 0.0
    %v2042 = vmax.f32 %v2037, 0.0
    %v2043 = vld [vmem:[%s3] sm:$0x3]
    %v2045 = vlaneseq
    %v2046 = vshrl.u32 %v2045, 7
    %v2047 = vsub.s32 0, %v2046
    %v2048 = vrot.slane %v2043, %v2047
    %v2049 = vlaneseq
    %v2050 = vshrl.u32 %v2049, 7
    %v2051 = vsub.s32 1, %v2050
    %v2052 = vrot.slane %v2043, %v2051
    %v2055 = vmul.f32 %v2039, %v2048
    %v2056 = vmul.f32 %v2040, %v2052
    %v2057 = vmul.f32 %v2041, %v2048
    %v2058 = vmul.f32 %v2042, %v2052
    %v2059 = vadd.f32 %v2055, %v2056
    %2060 = vadd.xlane.f32.xlu0 %v2059
    %v2061 = vpop.xlane.xlu0 %2060
    %v2062 = vadd.f32 %v2057, %v2058
    %2063 = vadd.xlane.f32.xlu0 %v2062
    %v2064 = vpop.xlane.xlu0 %2063
    %v2065 = vld [vmem:[#allocation2] sm:$0x1]
    %2067 = vset.pattern.permute.xlu0 0
    %2068 = vperm.xlu0 %2067, %v2065
    %v2069 = vpop.permute.xlu0 %2068
    %v2071 = vlaneseq
    %v2072 = vshrl.u32 %v2071, 7
    %v2073 = vsub.s32 0, %v2072
    %v2074 = vrot.slane %v2069, %v2073
    %v2075 = vadd.f32 %v2061, %v2074
    %v2076 = vadd.f32 %v2064, %v2074
    %v2077 = vsub.f32 0.0, %v2075
    %v2078 = vsub.f32 0.0, %v2076
    %v2079 = vmul.f32 %v2077, 1.442695
    %v2080 = vpow.pop %v2079
    %v2081 = vmul.f32 %v2078, 1.442695
    %v2082 = vpow.pop %v2081
    %v2083 = vadd.f32 %v2080, 1.0
    %v2084 = vadd.f32 %v2082, 1.0
    %v2085 = vrcp.pop %v2083
    %v2086 = vrcp.pop %v2084
    %v2089 = vlaneseq
    %v2090 = vand.u32 %v2089, 127
    %v2091 = vlaneseq
    %v2092 = vshrl.u32 %v2091, 7
    %v2093 = vsub.s32 %v2090, %v2092
    %v2094 = vrot.slane %v2085, %v2093
    %v2095 = vadd.s32 %v2090, 4294967288
    %v2096 = vlaneseq
    %v2097 = vshrl.u32 %v2096, 7
    %v2098 = vsub.s32 %v2095, %v2097
    %v2099 = vrot.slane %v2086, %v2098
    %vm2100 = vcmask 130112
    %v2101 = vsel %vm2100, %v2099, %v2094
    %vm2103 = vcmask 122880
    %2104 = vst.msk [vmem:[#allocation8] sm:$0x1] %vm2103, %v2101
    // Predicated region
    $region30: #{tpu_custom_call.1} parent=1 // pred_check
      _
    $region31: #{tpu_custom_call.1} parent=1 // pred_check_branch
      %2106 = sbr.rel (0) target = $region33
    $region32: #{tpu_custom_call.1} parent=1 // pred_region
      %s2108 = ssub.s32 16, 16
      %2109 = vsyncadd [#allocation5], %s2108
      %s2111 = sshll.u32 [#allocation8], 4
      %s2112 = int_to_ptr.vmem [resolvable:$true] %s2111
      %2114 = dma.vmem_to_hbm [thread:$0]  %s2112, 16, %s5, [#allocation5]
    $region33: #{tpu_custom_call.1} parent=1 // pred_fallthru
      _
    // Predicated region
    $region34: #{tpu_custom_call.1} parent=1 // pred_check
      _
    $region35: #{tpu_custom_call.1} parent=1 // pred_check_branch
      %2116 = sbr.rel (0) target = $region37
    $region36: #{tpu_custom_call.1} parent=1 // pred_region
      %2117 = dma.done [#allocation5], 16
    $region37: #{tpu_custom_call.1} parent=1 // pred_fallthru
      _
    %2118 = vsyncpa [#allocation4], 1
    %2119 = vsyncpa [#allocation7], 1
    %2120 = vsyncpa [#allocation5], 1

</llo_original>
